<compile_context>
chip_gen: v5e
topology: v5e:2x2
jax: 0.10.0
libtpu: 0.0.40
codegen_flags: <defaults>
</compile_context>

<pallas_src>
import functools

import jax
import jax.numpy as jnp
from jax.experimental import pallas as pl
from jax.experimental.pallas import tpu as pltpu


def _layer_norm(x, gamma, beta, eps):
    # Single-pass statistics: var = E[x^2] - E[x]^2 (one reduction pair, not two).
    mean = jnp.mean(x, axis=-1, keepdims=True)
    mean_sq = jnp.mean(x * x, axis=-1, keepdims=True)
    var = mean_sq - mean * mean
    return (x - mean) * jax.lax.rsqrt(var + eps) * gamma + beta


def _transformer_block_kernel(*refs, num_heads, block_batch, seq_len, sm_scale,
                              eps, has_mask, approx_softmax):
    refs = list(refs)
    x_ref, dp_ref = refs[0], refs[1]
    nxt = 2
    mask_ref = None
    if has_mask:
        mask_ref = refs[2]
        nxt = 3
    (g1_ref, be1_ref, wqkv_ref, bqkv_ref, wproj_ref, bproj_ref,
     g2_ref, be2_ref, w1_ref, mb1_ref, w2_ref, mb2_ref,
     o_ref, qkv_ref, ctx_ref) = refs[nxt:]

    Bt, L = block_batch, seq_len
    R, C = x_ref.shape                 # R == Bt * L lane-dense rows
    H = num_heads
    D = C // H
    cdt = wqkv_ref.dtype               # MXU operand dtype (bf16 fast / f32 exact)

    x = x_ref[...].astype(jnp.float32)            # (R, C)
    dp = dp_ref[...].astype(jnp.float32)          # (R, 2) DropPath scales per row
    s_attn = dp[:, 0:1]
    s_mlp = dp[:, 1:2]

    # ---------------- attention branch ----------------
    h = _layer_norm(x, g1_ref[...], be1_ref[...], eps)
    qkv_ref[...] = (jnp.dot(h.astype(cdt), wqkv_ref[...],
                            preferred_element_type=jnp.float32)
                    + bqkv_ref[...]).astype(cdt)             # (R, 3C) scratch

    mask = mask_ref[...] if has_mask else None               # (L, L) additive

    # TODO(synk): group several heads per MXU pass when D << 256 (K underfill);
    # TODO(synk): pl.when branch skip for fully-dropped DropPath tiles.
    for hd in range(H):
        q = qkv_ref[:, hd * D:(hd + 1) * D].reshape(Bt, L, D)
        k = qkv_ref[:, C + hd * D:C + (hd + 1) * D].reshape(Bt, L, D)
        v = qkv_ref[:, 2 * C + hd * D:2 * C + (hd + 1) * D].reshape(Bt, L, D)

        s = jnp.einsum("bld,bmd->blm", q, k,
                       preferred_element_type=jnp.float32) * sm_scale
        if mask is not None:
            s = s + mask                                     # broadcast over Bt
        s_max = jnp.max(s, axis=-1, keepdims=True)
        e = jnp.exp(s - s_max)
        denom = jnp.sum(e, axis=-1, keepdims=True)
        if approx_softmax:
            p = e * pl.reciprocal(denom, approx=True)        # EUP, not VALU divide
        else:
            p = e / denom
        # TODO(synk): attn_drop with dropout_p > 0 (module default 0.0 -> identity).
        ctx = jnp.einsum("blm,bmd->bld", p.astype(cdt), v,
                         preferred_element_type=jnp.float32)
        ctx_ref[:, hd * D:(hd + 1) * D] = ctx.reshape(R, D).astype(cdt)

    y = jnp.dot(ctx_ref[...], wproj_ref[...],
                preferred_element_type=jnp.float32) + bproj_ref[...]
    # TODO(synk): proj_drop with dropout_p > 0 (module default 0.0 -> identity).
    x = x + s_attn * y                                        # DropPath residual

    # ---------------- MLP branch ----------------
    h2 = _layer_norm(x, g2_ref[...], be2_ref[...], eps)
    mid = jnp.dot(h2.astype(cdt), w1_ref[...],
                  preferred_element_type=jnp.float32) + mb1_ref[...]
    # TODO(synk): exact erf-based GELU (PyTorch nn.GELU default); tanh approx used.
    mid = jax.nn.gelu(mid, approximate=True)
    y2 = jnp.dot(mid.astype(cdt), w2_ref[...],
                 preferred_element_type=jnp.float32) + mb2_ref[...]
    x = x + s_mlp * y2                                        # DropPath residual

    o_ref[...] = x.astype(o_ref.dtype)


def droppath_scales(rng, batch, droppath_p, training):
    """Per-sample DropPath scales (0 or 1/keep_prob), one per residual branch,
    mirroring torch: floor(keep_prob + U[0,1)) / keep_prob."""
    if droppath_p == 0.0 or not training:
        return jnp.ones((batch, 2), jnp.float32)
    keep_prob = 1.0 - droppath_p
    u = jax.random.uniform(rng, (batch, 2), dtype=jnp.float32)
    return jnp.floor(keep_prob + u) / keep_prob


def _pick_batch_tile(batch, seq_len, target_rows=256):
    divisors = [d for d in range(1, batch + 1) if batch % d == 0]
    feasible = [d for d in divisors if d == batch or (d * seq_len) % 8 == 0]
    good = [d for d in feasible if d * seq_len <= target_rows]
    return max(good) if good else min(feasible)


def _vmem_limit_bytes(rows, C, M, w_itemsize):
    weights = (3 * C * C + C * C + 2 * C * M) * w_itemsize * 2   # double-buffered
    act = rows * C * 4 * 2 * 2                  # x + out blocks, double-buffered
    scratch = rows * (3 * C + C) * w_itemsize   # qkv + ctx VMEM scratch
    interm = rows * max(3 * C, M) * 4 * 6       # headroom for in-register temps
    est = weights + act + scratch + interm + (1 << 20)
    return int(min(max(est, 32 << 20), 96 << 20))


def transformer_block(x, params, *, num_heads, attention_mask=None,
                      dropout_p=0.0, droppath_p=0.0, training=False, rng=None,
                      eps=1e-5, compute_dtype=jnp.bfloat16, block_batch=None):
    """Fused TransformerBlock forward.  x: (B, L, C)."""
    if dropout_p != 0.0:
        # TODO(synk): Dropout with p > 0 inside attention / MLP.
        raise NotImplementedError("only dropout_p == 0.0 (module default) is supported")
    B, L, C = x.shape
    H = num_heads
    assert C % H == 0
    D = C // H
    M = params["w1"].shape[1]
    assert params["w2"].shape[1] == C, "out_feat must equal in_feat for the residual"

    if rng is None:
        rng = jax.random.PRNGKey(0)
    scales = droppath_scales(rng, B, droppath_p, training)        # (B, 2) f32

    Bt = block_batch or _pick_batch_tile(B, L)
    assert B % Bt == 0 and (Bt == B or (Bt * L) % 8 == 0)
    R = Bt * L
    cdt = compute_dtype

    row = lambda v: v.reshape(1, -1).astype(jnp.float32)

    x2 = x.reshape(B * L, C)                       # lane-dense (rows, C) slab
    dp_rows = jnp.repeat(scales, L, axis=0)        # (B*L, 2) per-row scales

    args = [x2, dp_rows]
    in_specs = [pl.BlockSpec((R, C), lambda i: (i, 0)),
                pl.BlockSpec((R, 2), lambda i: (i, 0))]

    has_mask = attention_mask is not None
    if has_mask:
        am = jnp.asarray(attention_mask, jnp.float32)
        if am.ndim == 3:
            assert am.shape[0] == 1, "only a mask shared across the batch is fused"
            am = am[0]
        assert am.shape == (L, L), (
            "only a (L, L) additive mask shared across batch & heads is supported")
        args.append(am)
        in_specs.append(pl.BlockSpec((L, L), lambda i: (0, 0)))   # one block, reused

    full = lambda shape: pl.BlockSpec(shape, lambda i, _n=len(shape): (0,) * _n)
    # Weights as bf16 MXU operands (halves HBM/VMEM; fits v7x's 64 MiB at real
    # C/M); biases / LN params stay f32 for the VPU math.
    args += [row(params["g1"]), row(params["be1"]),
             params["wqkv"].astype(cdt), row(params["bqkv"]),
             params["wproj"].astype(cdt), row(params["bproj"]),
             row(params["g2"]), row(params["be2"]),
             params["w1"].astype(cdt), row(params["b1"]),
             params["w2"].astype(cdt), row(params["b2"])]
    in_specs += [full((1, C)), full((1, C)),
                 full((C, 3 * C)), full((1, 3 * C)),
                 full((C, C)), full((1, C)),
                 full((1, C)), full((1, C)),
                 full((C, M)), full((1, M)),
                 full((M, C)), full((1, C))]

    kernel = functools.partial(
        _transformer_block_kernel,
        num_heads=H, block_batch=Bt, seq_len=L, sm_scale=D ** -0.5, eps=eps,
        has_mask=has_mask, approx_softmax=(cdt != jnp.float32))

    out2 = pl.pallas_call(
        kernel,
        out_shape=jax.ShapeDtypeStruct((B * L, C), x.dtype),
        grid=(B // Bt,),
        in_specs=in_specs,
        out_specs=pl.BlockSpec((R, C), lambda i: (i, 0)),
        scratch_shapes=[pltpu.VMEM((R, 3 * C), cdt),   # qkv activations
                        pltpu.VMEM((R, C), cdt)],      # per-head context slab
        compiler_params=pltpu.CompilerParams(
            dimension_semantics=("parallel",),         # batch tiles independent
            vmem_limit_bytes=_vmem_limit_bytes(R, C, M, jnp.dtype(cdt).itemsize)),
    )(*args)
    return out2.reshape(B, L, C)


# ----------------------------- pure-JAX reference -----------------------------
def transformer_block_ref(x, params, *, num_heads, attention_mask, scales, eps=1e-5):
    B, L, C = x.shape
    H = num_heads
    D = C // H
    with jax.default_matmul_precision("highest"):
        def ln(v, g, b):
            mu = v.mean(-1, keepdims=True)
            var = ((v - mu) ** 2).mean(-1, keepdims=True)
            return (v - mu) / jnp.sqrt(var + eps) * g + b

        def attn(h):
            qkv = h @ params["wqkv"] + params["bqkv"]
            qkv = qkv.reshape(B, L, 3, H, D).transpose(2, 0, 3, 1, 4)
            q, k, v = qkv[0], qkv[1], qkv[2]                       # (B, H, L, D)
            a = jnp.einsum("bhld,bhmd->bhlm", q, k) * (D ** -0.5)
            if attention_mask is not None:
                a = a + attention_mask[None, None, :, :]
            a = jax.nn.softmax(a, axis=-1)
            ctx = jnp.einsum("bhlm,bhmd->bhld", a, v)
            ctx = ctx.transpose(0, 2, 1, 3).reshape(B, L, C)
            return ctx @ params["wproj"] + params["bproj"]

        def mlp(h):
            m = jax.nn.gelu(h @ params["w1"] + params["b1"], approximate=True)
            return m @ params["w2"] + params["b2"]

        s0 = scales[:, 0][:, None, None]
        s1 = scales[:, 1][:, None, None]
        x = x + s0 * attn(ln(x, params["g1"], params["be1"]))
        x = x + s1 * mlp(ln(x, params["g2"], params["be2"]))
    return x


if __name__ == "__main__":
    key = jax.random.PRNGKey(0)
    B, L, C, H, mlp_ratio = 2, 8, 32, 8, 4
    M = C * mlp_ratio
    ks = jax.random.split(key, 12)

    x = jax.random.normal(ks[0], (B, L, C), dtype=jnp.float32)
    params = {
        "g1":    1.0 + 0.1 * jax.random.normal(ks[1], (C,), jnp.float32),
        "be1":   0.1 * jax.random.normal(ks[2], (C,), jnp.float32),
        "wqkv":  jax.random.normal(ks[3], (C, 3 * C), jnp.float32) * (C ** -0.5),
        "bqkv":  jnp.zeros((3 * C,), jnp.float32),          # qkv_bias=False
        "wproj": jax.random.normal(ks[4], (C, C), jnp.float32) * (C ** -0.5),
        "bproj": 0.02 * jax.random.normal(ks[5], (C,), jnp.float32),
        "g2":    1.0 + 0.1 * jax.random.normal(ks[6], (C,), jnp.float32),
        "be2":   0.1 * jax.random.normal(ks[7], (C,), jnp.float32),
        "w1":    jax.random.normal(ks[8], (C, M), jnp.float32) * (C ** -0.5),
        "b1":    0.02 * jax.random.normal(ks[9], (M,), jnp.float32),
        "w2":    jax.random.normal(ks[10], (M, C), jnp.float32) * (M ** -0.5),
        "b2":    0.02 * jax.random.normal(ks[11], (C,), jnp.float32),
    }

    ones_scales = jnp.ones((B, 2), jnp.float32)

    # 1) f32 compute path, eval mode (DropPath inactive), no mask — tight check.
    out_f32 = jax.block_until_ready(
        transformer_block(x, params, num_heads=H, droppath_p=0.5, training=False,
                          compute_dtype=jnp.float32))
    ref_eval = transformer_block_ref(
        x, params, num_heads=H, attention_mask=None, scales=ones_scales)
    assert jnp.allclose(out_f32, ref_eval, atol=1e-4, rtol=1e-4), "f32 eval mismatch"

    # 2) default bf16 MXU path, training mode with DropPath p=0.5.
    dp_rng = jax.random.PRNGKey(7)
    out_bf16 = jax.block_until_ready(
        transformer_block(x, params, num_heads=H, droppath_p=0.5,
                          training=True, rng=dp_rng))
    tr_scales = droppath_scales(dp_rng, B, 0.5, True)
    ref_train = transformer_block_ref(
        x, params, num_heads=H, attention_mask=None, scales=tr_scales)
    assert jnp.allclose(out_bf16, ref_train, atol=5e-2, rtol=5e-2), "bf16 train mismatch"

    # 3) bf16 path with a shared additive (causal) mask — no (B, L, L) HBM array.
    causal = jnp.where(jnp.tril(jnp.ones((L, L), jnp.bool_)),
                       0.0, -1e9).astype(jnp.float32)
    out_mask = jax.block_until_ready(
        transformer_block(x, params, num_heads=H, attention_mask=causal))
    ref_mask = transformer_block_ref(
        x, params, num_heads=H, attention_mask=causal, scales=ones_scales)
    assert jnp.allclose(out_mask, ref_mask, atol=5e-2, rtol=5e-2), "masked mismatch"

    print("KERNEL_OK")
</pallas_src>

<mosaic_0001>
module attributes {stable_mosaic.version = 11 : i64} {
  func.func @_transformer_block_kernel(%arg0: i32, %arg1: memref<16x32xf32, #tpu.memory_space<vmem>>, %arg2: memref<16x2xf32, #tpu.memory_space<vmem>>, %arg3: memref<1x32xf32, #tpu.memory_space<vmem>>, %arg4: memref<1x32xf32, #tpu.memory_space<vmem>>, %arg5: memref<32x96xf32, #tpu.memory_space<vmem>>, %arg6: memref<1x96xf32, #tpu.memory_space<vmem>>, %arg7: memref<32x32xf32, #tpu.memory_space<vmem>>, %arg8: memref<1x32xf32, #tpu.memory_space<vmem>>, %arg9: memref<1x32xf32, #tpu.memory_space<vmem>>, %arg10: memref<1x32xf32, #tpu.memory_space<vmem>>, %arg11: memref<32x128xf32, #tpu.memory_space<vmem>>, %arg12: memref<1x128xf32, #tpu.memory_space<vmem>>, %arg13: memref<128x32xf32, #tpu.memory_space<vmem>>, %arg14: memref<1x32xf32, #tpu.memory_space<vmem>>, %arg15: memref<16x32xf32, #tpu.memory_space<vmem>>, %arg16: memref<16x96xf32, #tpu.memory_space<vmem>>, %arg17: memref<16x32xf32, #tpu.memory_space<vmem>>) attributes {dimension_semantics = [#tpu.dimension_semantics<parallel>], iteration_bounds = array<i64: 1>, scalar_prefetch = 0 : i64, scratch_operands = 2 : i64, tpu.core_type = #tpu.core_type<tc>, window_params = [{transform_indices = @transform_0, window_bounds = array<i64: 16, 32>}, {transform_indices = @transform_1, window_bounds = array<i64: 16, 2>}, {pipeline_mode = #tpu.pipeline_mode<synchronous>, transform_indices = @transform_2, window_bounds = array<i64: 1, 32>}, {pipeline_mode = #tpu.pipeline_mode<synchronous>, transform_indices = @transform_3, window_bounds = array<i64: 1, 32>}, {pipeline_mode = #tpu.pipeline_mode<synchronous>, transform_indices = @transform_4, window_bounds = array<i64: 32, 96>}, {pipeline_mode = #tpu.pipeline_mode<synchronous>, transform_indices = @transform_5, window_bounds = array<i64: 1, 96>}, {pipeline_mode = #tpu.pipeline_mode<synchronous>, transform_indices = @transform_6, window_bounds = array<i64: 32, 32>}, {pipeline_mode = #tpu.pipeline_mode<synchronous>, transform_indices = @transform_7, window_bounds = array<i64: 1, 32>}, {pipeline_mode = #tpu.pipeline_mode<synchronous>, transform_indices = @transform_8, window_bounds = array<i64: 1, 32>}, {pipeline_mode = #tpu.pipeline_mode<synchronous>, transform_indices = @transform_9, window_bounds = array<i64: 1, 32>}, {pipeline_mode = #tpu.pipeline_mode<synchronous>, transform_indices = @transform_10, window_bounds = array<i64: 32, 128>}, {pipeline_mode = #tpu.pipeline_mode<synchronous>, transform_indices = @transform_11, window_bounds = array<i64: 1, 128>}, {pipeline_mode = #tpu.pipeline_mode<synchronous>, transform_indices = @transform_12, window_bounds = array<i64: 128, 32>}, {pipeline_mode = #tpu.pipeline_mode<synchronous>, transform_indices = @transform_13, window_bounds = array<i64: 1, 32>}, {transform_indices = @transform_14, window_bounds = array<i64: 16, 32>}]} {
    %c0 = arith.constant 0 : index
    %c0_0 = arith.constant 0 : index
    %0 = vector.load %arg1[%c0, %c0_0] : memref<16x32xf32, #tpu.memory_space<vmem>>, vector<16x32xf32>
    %c0_1 = arith.constant 0 : index
    %c0_2 = arith.constant 0 : index
    %1 = vector.load %arg2[%c0_1, %c0_2] : memref<16x2xf32, #tpu.memory_space<vmem>>, vector<16x2xf32>
    %2 = vector.extract_strided_slice %1 {offsets = [0, 0], sizes = [16, 1], strides = [1, 1]} : vector<16x2xf32> to vector<16x1xf32>
    %3 = vector.extract_strided_slice %1 {offsets = [0, 1], sizes = [16, 1], strides = [1, 1]} : vector<16x2xf32> to vector<16x1xf32>
    %c0_3 = arith.constant 0 : index
    %c0_4 = arith.constant 0 : index
    %4 = vector.load %arg3[%c0_3, %c0_4] : memref<1x32xf32, #tpu.memory_space<vmem>>, vector<1x32xf32>
    %c0_5 = arith.constant 0 : index
    %c0_6 = arith.constant 0 : index
    %5 = vector.load %arg4[%c0_5, %c0_6] : memref<1x32xf32, #tpu.memory_space<vmem>>, vector<1x32xf32>
    %cst = arith.constant dense<0.000000e+00> : vector<16xf32>
    %6 = vector.multi_reduction <add>, %0, %cst [1] : vector<16x32xf32> to vector<16xf32>
    %7 = vector.shape_cast %6 : vector<16xf32> to vector<16x1xf32>
    %cst_7 = arith.constant 3.200000e+01 : f32
    %8 = vector.broadcast %cst_7 : f32 to vector<16x1xf32>
    %9 = arith.divf %7, %8 : vector<16x1xf32>
    %10 = arith.mulf %0, %0 : vector<16x32xf32>
    %cst_8 = arith.constant dense<0.000000e+00> : vector<16xf32>
    %11 = vector.multi_reduction <add>, %10, %cst_8 [1] : vector<16x32xf32> to vector<16xf32>
    %12 = vector.shape_cast %11 : vector<16xf32> to vector<16x1xf32>
    %cst_9 = arith.constant 3.200000e+01 : f32
    %13 = vector.broadcast %cst_9 : f32 to vector<16x1xf32>
    %14 = arith.divf %12, %13 : vector<16x1xf32>
    %15 = arith.mulf %9, %9 : vector<16x1xf32>
    %16 = arith.subf %14, %15 : vector<16x1xf32>
    %17 = vector.broadcast %9 : vector<16x1xf32> to vector<16x32xf32>
    %18 = arith.subf %0, %17 : vector<16x32xf32>
    %cst_10 = arith.constant 9.99999974E-6 : f32
    %19 = vector.broadcast %cst_10 : f32 to vector<16x1xf32>
    %20 = arith.addf %16, %19 : vector<16x1xf32>
    %21 = math.rsqrt %20 : vector<16x1xf32>
    %22 = vector.broadcast %21 : vector<16x1xf32> to vector<16x32xf32>
    %23 = arith.mulf %18, %22 : vector<16x32xf32>
    %24 = vector.broadcast %4 : vector<1x32xf32> to vector<16x32xf32>
    %25 = arith.mulf %23, %24 : vector<16x32xf32>
    %26 = vector.broadcast %5 : vector<1x32xf32> to vector<16x32xf32>
    %27 = arith.addf %25, %26 : vector<16x32xf32>
    %c0_11 = arith.constant 0 : index
    %c0_12 = arith.constant 0 : index
    %28 = vector.load %arg5[%c0_11, %c0_12] : memref<32x96xf32, #tpu.memory_space<vmem>>, vector<32x96xf32>
    %cst_13 = arith.constant dense<0.000000e+00> : vector<16x96xf32>
    %29 = tpu.matmul %27, %28, %cst_13 {dimension_numbers = #tpu.dot_dimension_numbers<[1], [0], [0], [1], [0, 0, 1, 1], [], []>} : vector<16x32xf32>, vector<32x96xf32>, vector<16x96xf32> -> vector<16x96xf32>
    %c0_14 = arith.constant 0 : index
    %c0_15 = arith.constant 0 : index
    %30 = vector.load %arg6[%c0_14, %c0_15] : memref<1x96xf32, #tpu.memory_space<vmem>>, vector<1x96xf32>
    %31 = vector.broadcast %30 : vector<1x96xf32> to vector<16x96xf32>
    %32 = arith.addf %29, %31 : vector<16x96xf32>
    %c0_16 = arith.constant 0 : index
    %c0_17 = arith.constant 0 : index
    %33 = vector.load %arg16[%c0_16, %c0_17] : memref<16x96xf32, #tpu.memory_space<vmem>>, vector<16x96xf32>
    tpu.vector_store %arg16[%c0_16, %c0_17], %32 {strides = array<i32>} : memref<16x96xf32, #tpu.memory_space<vmem>>, vector<16x96xf32>,
    %c0_18 = arith.constant 0 : index
    %c0_19 = arith.constant 0 : index
    %34 = vector.load %arg16[%c0_18, %c0_19] : memref<16x96xf32, #tpu.memory_space<vmem>>, vector<16x4xf32>
    %35 = vector.shape_cast %34 : vector<16x4xf32> to vector<2x8x4xf32>
    %c0_20 = arith.constant 0 : index
    %c32 = arith.constant 32 : index
    %36 = vector.load %arg16[%c0_20, %c32] : memref<16x96xf32, #tpu.memory_space<vmem>>, vector<16x4xf32>
    %37 = vector.shape_cast %36 : vector<16x4xf32> to vector<2x8x4xf32>
    %c0_21 = arith.constant 0 : index
    %c64 = arith.constant 64 : index
    %38 = vector.load %arg16[%c0_21, %c64] : memref<16x96xf32, #tpu.memory_space<vmem>>, vector<16x4xf32>
    %39 = vector.shape_cast %38 : vector<16x4xf32> to vector<2x8x4xf32>
    "tpu.trace_start"() <{level = 10 : i32, message = "bld,bmd->blm"}> : () -> ()
    %cst_22 = arith.constant dense<0.000000e+00> : vector<2x8x8xf32>
    %40 = tpu.matmul %35, %37, %cst_22 {dimension_numbers = #tpu.dot_dimension_numbers<[2], [2], [1], [1], [0, 0, 0, 1, 1, 1], [0], [0]>} : vector<2x8x4xf32>, vector<2x8x4xf32>, vector<2x8x8xf32> -> vector<2x8x8xf32>
    "tpu.trace_stop"() : () -> ()
    %cst_23 = arith.constant 5.000000e-01 : f32
    %41 = vector.broadcast %cst_23 : f32 to vector<2x8x8xf32>
    %42 = arith.mulf %40, %41 : vector<2x8x8xf32>
    %cst_24 = arith.constant dense<0xFF800000> : vector<2x8xf32>
    %43 = vector.multi_reduction <maximumf>, %42, %cst_24 [2] : vector<2x8x8xf32> to vector<2x8xf32>
    %44 = vector.shape_cast %43 : vector<2x8xf32> to vector<2x8x1xf32>
    %45 = vector.broadcast %44 : vector<2x8x1xf32> to vector<2x8x8xf32>
    %46 = arith.subf %42, %45 : vector<2x8x8xf32>
    %47 = math.exp %46 : vector<2x8x8xf32>
    %cst_25 = arith.constant dense<0.000000e+00> : vector<2x8xf32>
    %48 = vector.multi_reduction <add>, %47, %cst_25 [2] : vector<2x8x8xf32> to vector<2x8xf32>
    %49 = vector.shape_cast %48 : vector<2x8xf32> to vector<2x8x1xf32>
    %50 = vector.broadcast %49 : vector<2x8x1xf32> to vector<2x8x8xf32>
    %51 = arith.divf %47, %50 : vector<2x8x8xf32>
    "tpu.trace_start"() <{level = 10 : i32, message = "blm,bmd->bld"}> : () -> ()
    %cst_26 = arith.constant dense<0.000000e+00> : vector<2x8x4xf32>
    %52 = tpu.matmul %51, %39, %cst_26 {dimension_numbers = #tpu.dot_dimension_numbers<[2], [1], [1], [2], [0, 0, 0, 1, 1, 2], [0], [0]>} : vector<2x8x8xf32>, vector<2x8x4xf32>, vector<2x8x4xf32> -> vector<2x8x4xf32>
    "tpu.trace_stop"() : () -> ()
    %53 = vector.shape_cast %52 : vector<2x8x4xf32> to vector<16x4xf32>
    %c0_27 = arith.constant 0 : index
    %c0_28 = arith.constant 0 : index
    %54 = vector.load %arg17[%c0_27, %c0_28] : memref<16x32xf32, #tpu.memory_space<vmem>>, vector<16x4xf32>
    tpu.vector_store %arg17[%c0_27, %c0_28], %53 {strides = array<i32>} : memref<16x32xf32, #tpu.memory_space<vmem>>, vector<16x4xf32>,
    %c0_29 = arith.constant 0 : index
    %c4 = arith.constant 4 : index
    %55 = vector.load %arg16[%c0_29, %c4] : memref<16x96xf32, #tpu.memory_space<vmem>>, vector<16x4xf32>
    %56 = vector.shape_cast %55 : vector<16x4xf32> to vector<2x8x4xf32>
    %c0_30 = arith.constant 0 : index
    %c36 = arith.constant 36 : index
    %57 = vector.load %arg16[%c0_30, %c36] : memref<16x96xf32, #tpu.memory_space<vmem>>, vector<16x4xf32>
    %58 = vector.shape_cast %57 : vector<16x4xf32> to vector<2x8x4xf32>
    %c0_31 = arith.constant 0 : index
    %c68 = arith.constant 68 : index
    %59 = vector.load %arg16[%c0_31, %c68] : memref<16x96xf32, #tpu.memory_space<vmem>>, vector<16x4xf32>
    %60 = vector.shape_cast %59 : vector<16x4xf32> to vector<2x8x4xf32>
    "tpu.trace_start"() <{level = 10 : i32, message = "bld,bmd->blm"}> : () -> ()
    %cst_32 = arith.constant dense<0.000000e+00> : vector<2x8x8xf32>
    %61 = tpu.matmul %56, %58, %cst_32 {dimension_numbers = #tpu.dot_dimension_numbers<[2], [2], [1], [1], [0, 0, 0, 1, 1, 1], [0], [0]>} : vector<2x8x4xf32>, vector<2x8x4xf32>, vector<2x8x8xf32> -> vector<2x8x8xf32>
    "tpu.trace_stop"() : () -> ()
    %cst_33 = arith.constant 5.000000e-01 : f32
    %62 = vector.broadcast %cst_33 : f32 to vector<2x8x8xf32>
    %63 = arith.mulf %61, %62 : vector<2x8x8xf32>
    %cst_34 = arith.constant dense<0xFF800000> : vector<2x8xf32>
    %64 = vector.multi_reduction <maximumf>, %63, %cst_34 [2] : vector<2x8x8xf32> to vector<2x8xf32>
    %65 = vector.shape_cast %64 : vector<2x8xf32> to vector<2x8x1xf32>
    %66 = vector.broadcast %65 : vector<2x8x1xf32> to vector<2x8x8xf32>
    %67 = arith.subf %63, %66 : vector<2x8x8xf32>
    %68 = math.exp %67 : vector<2x8x8xf32>
    %cst_35 = arith.constant dense<0.000000e+00> : vector<2x8xf32>
    %69 = vector.multi_reduction <add>, %68, %cst_35 [2] : vector<2x8x8xf32> to vector<2x8xf32>
    %70 = vector.shape_cast %69 : vector<2x8xf32> to vector<2x8x1xf32>
    %71 = vector.broadcast %70 : vector<2x8x1xf32> to vector<2x8x8xf32>
    %72 = arith.divf %68, %71 : vector<2x8x8xf32>
    "tpu.trace_start"() <{level = 10 : i32, message = "blm,bmd->bld"}> : () -> ()
    %cst_36 = arith.constant dense<0.000000e+00> : vector<2x8x4xf32>
    %73 = tpu.matmul %72, %60, %cst_36 {dimension_numbers = #tpu.dot_dimension_numbers<[2], [1], [1], [2], [0, 0, 0, 1, 1, 2], [0], [0]>} : vector<2x8x8xf32>, vector<2x8x4xf32>, vector<2x8x4xf32> -> vector<2x8x4xf32>
    "tpu.trace_stop"() : () -> ()
    %74 = vector.shape_cast %73 : vector<2x8x4xf32> to vector<16x4xf32>
    %c0_37 = arith.constant 0 : index
    %c4_38 = arith.constant 4 : index
    %75 = vector.load %arg17[%c0_37, %c4_38] : memref<16x32xf32, #tpu.memory_space<vmem>>, vector<16x4xf32>
    tpu.vector_store %arg17[%c0_37, %c4_38], %74 {strides = array<i32>} : memref<16x32xf32, #tpu.memory_space<vmem>>, vector<16x4xf32>,
    %c0_39 = arith.constant 0 : index
    %c8 = arith.constant 8 : index
    %76 = vector.load %arg16[%c0_39, %c8] : memref<16x96xf32, #tpu.memory_space<vmem>>, vector<16x4xf32>
    %77 = vector.shape_cast %76 : vector<16x4xf32> to vector<2x8x4xf32>
    %c0_40 = arith.constant 0 : index
    %c40 = arith.constant 40 : index
    %78 = vector.load %arg16[%c0_40, %c40] : memref<16x96xf32, #tpu.memory_space<vmem>>, vector<16x4xf32>
    %79 = vector.shape_cast %78 : vector<16x4xf32> to vector<2x8x4xf32>
    %c0_41 = arith.constant 0 : index
    %c72 = arith.constant 72 : index
    %80 = vector.load %arg16[%c0_41, %c72] : memref<16x96xf32, #tpu.memory_space<vmem>>, vector<16x4xf32>
    %81 = vector.shape_cast %80 : vector<16x4xf32> to vector<2x8x4xf32>
    "tpu.trace_start"() <{level = 10 : i32, message = "bld,bmd->blm"}> : () -> ()
    %cst_42 = arith.constant dense<0.000000e+00> : vector<2x8x8xf32>
    %82 = tpu.matmul %77, %79, %cst_42 {dimension_numbers = #tpu.dot_dimension_numbers<[2], [2], [1], [1], [0, 0, 0, 1, 1, 1], [0], [0]>} : vector<2x8x4xf32>, vector<2x8x4xf32>, vector<2x8x8xf32> -> vector<2x8x8xf32>
    "tpu.trace_stop"() : () -> ()
    %cst_43 = arith.constant 5.000000e-01 : f32
    %83 = vector.broadcast %cst_43 : f32 to vector<2x8x8xf32>
    %84 = arith.mulf %82, %83 : vector<2x8x8xf32>
    %cst_44 = arith.constant dense<0xFF800000> : vector<2x8xf32>
    %85 = vector.multi_reduction <maximumf>, %84, %cst_44 [2] : vector<2x8x8xf32> to vector<2x8xf32>
    %86 = vector.shape_cast %85 : vector<2x8xf32> to vector<2x8x1xf32>
    %87 = vector.broadcast %86 : vector<2x8x1xf32> to vector<2x8x8xf32>
    %88 = arith.subf %84, %87 : vector<2x8x8xf32>
    %89 = math.exp %88 : vector<2x8x8xf32>
    %cst_45 = arith.constant dense<0.000000e+00> : vector<2x8xf32>
    %90 = vector.multi_reduction <add>, %89, %cst_45 [2] : vector<2x8x8xf32> to vector<2x8xf32>
    %91 = vector.shape_cast %90 : vector<2x8xf32> to vector<2x8x1xf32>
    %92 = vector.broadcast %91 : vector<2x8x1xf32> to vector<2x8x8xf32>
    %93 = arith.divf %89, %92 : vector<2x8x8xf32>
    "tpu.trace_start"() <{level = 10 : i32, message = "blm,bmd->bld"}> : () -> ()
    %cst_46 = arith.constant dense<0.000000e+00> : vector<2x8x4xf32>
    %94 = tpu.matmul %93, %81, %cst_46 {dimension_numbers = #tpu.dot_dimension_numbers<[2], [1], [1], [2], [0, 0, 0, 1, 1, 2], [0], [0]>} : vector<2x8x8xf32>, vector<2x8x4xf32>, vector<2x8x4xf32> -> vector<2x8x4xf32>
    "tpu.trace_stop"() : () -> ()
    %95 = vector.shape_cast %94 : vector<2x8x4xf32> to vector<16x4xf32>
    %c0_47 = arith.constant 0 : index
    %c8_48 = arith.constant 8 : index
    %96 = vector.load %arg17[%c0_47, %c8_48] : memref<16x32xf32, #tpu.memory_space<vmem>>, vector<16x4xf32>
    tpu.vector_store %arg17[%c0_47, %c8_48], %95 {strides = array<i32>} : memref<16x32xf32, #tpu.memory_space<vmem>>, vector<16x4xf32>,
    %c0_49 = arith.constant 0 : index
    %c12 = arith.constant 12 : index
    %97 = vector.load %arg16[%c0_49, %c12] : memref<16x96xf32, #tpu.memory_space<vmem>>, vector<16x4xf32>
    %98 = vector.shape_cast %97 : vector<16x4xf32> to vector<2x8x4xf32>
    %c0_50 = arith.constant 0 : index
    %c44 = arith.constant 44 : index
    %99 = vector.load %arg16[%c0_50, %c44] : memref<16x96xf32, #tpu.memory_space<vmem>>, vector<16x4xf32>
    %100 = vector.shape_cast %99 : vector<16x4xf32> to vector<2x8x4xf32>
    %c0_51 = arith.constant 0 : index
    %c76 = arith.constant 76 : index
    %101 = vector.load %arg16[%c0_51, %c76] : memref<16x96xf32, #tpu.memory_space<vmem>>, vector<16x4xf32>
    %102 = vector.shape_cast %101 : vector<16x4xf32> to vector<2x8x4xf32>
    "tpu.trace_start"() <{level = 10 : i32, message = "bld,bmd->blm"}> : () -> ()
    %cst_52 = arith.constant dense<0.000000e+00> : vector<2x8x8xf32>
    %103 = tpu.matmul %98, %100, %cst_52 {dimension_numbers = #tpu.dot_dimension_numbers<[2], [2], [1], [1], [0, 0, 0, 1, 1, 1], [0], [0]>} : vector<2x8x4xf32>, vector<2x8x4xf32>, vector<2x8x8xf32> -> vector<2x8x8xf32>
    "tpu.trace_stop"() : () -> ()
    %cst_53 = arith.constant 5.000000e-01 : f32
    %104 = vector.broadcast %cst_53 : f32 to vector<2x8x8xf32>
    %105 = arith.mulf %103, %104 : vector<2x8x8xf32>
    %cst_54 = arith.constant dense<0xFF800000> : vector<2x8xf32>
    %106 = vector.multi_reduction <maximumf>, %105, %cst_54 [2] : vector<2x8x8xf32> to vector<2x8xf32>
    %107 = vector.shape_cast %106 : vector<2x8xf32> to vector<2x8x1xf32>
    %108 = vector.broadcast %107 : vector<2x8x1xf32> to vector<2x8x8xf32>
    %109 = arith.subf %105, %108 : vector<2x8x8xf32>
    %110 = math.exp %109 : vector<2x8x8xf32>
    %cst_55 = arith.constant dense<0.000000e+00> : vector<2x8xf32>
    %111 = vector.multi_reduction <add>, %110, %cst_55 [2] : vector<2x8x8xf32> to vector<2x8xf32>
    %112 = vector.shape_cast %111 : vector<2x8xf32> to vector<2x8x1xf32>
    %113 = vector.broadcast %112 : vector<2x8x1xf32> to vector<2x8x8xf32>
    %114 = arith.divf %110, %113 : vector<2x8x8xf32>
    "tpu.trace_start"() <{level = 10 : i32, message = "blm,bmd->bld"}> : () -> ()
    %cst_56 = arith.constant dense<0.000000e+00> : vector<2x8x4xf32>
    %115 = tpu.matmul %114, %102, %cst_56 {dimension_numbers = #tpu.dot_dimension_numbers<[2], [1], [1], [2], [0, 0, 0, 1, 1, 2], [0], [0]>} : vector<2x8x8xf32>, vector<2x8x4xf32>, vector<2x8x4xf32> -> vector<2x8x4xf32>
    "tpu.trace_stop"() : () -> ()
    %116 = vector.shape_cast %115 : vector<2x8x4xf32> to vector<16x4xf32>
    %c0_57 = arith.constant 0 : index
    %c12_58 = arith.constant 12 : index
    %117 = vector.load %arg17[%c0_57, %c12_58] : memref<16x32xf32, #tpu.memory_space<vmem>>, vector<16x4xf32>
    tpu.vector_store %arg17[%c0_57, %c12_58], %116 {strides = array<i32>} : memref<16x32xf32, #tpu.memory_space<vmem>>, vector<16x4xf32>,
    %c0_59 = arith.constant 0 : index
    %c16 = arith.constant 16 : index
    %118 = vector.load %arg16[%c0_59, %c16] : memref<16x96xf32, #tpu.memory_space<vmem>>, vector<16x4xf32>
    %119 = vector.shape_cast %118 : vector<16x4xf32> to vector<2x8x4xf32>
    %c0_60 = arith.constant 0 : index
    %c48 = arith.constant 48 : index
    %120 = vector.load %arg16[%c0_60, %c48] : memref<16x96xf32, #tpu.memory_space<vmem>>, vector<16x4xf32>
    %121 = vector.shape_cast %120 : vector<16x4xf32> to vector<2x8x4xf32>
    %c0_61 = arith.constant 0 : index
    %c80 = arith.constant 80 : index
    %122 = vector.load %arg16[%c0_61, %c80] : memref<16x96xf32, #tpu.memory_space<vmem>>, vector<16x4xf32>
    %123 = vector.shape_cast %122 : vector<16x4xf32> to vector<2x8x4xf32>
    "tpu.trace_start"() <{level = 10 : i32, message = "bld,bmd->blm"}> : () -> ()
    %cst_62 = arith.constant dense<0.000000e+00> : vector<2x8x8xf32>
    %124 = tpu.matmul %119, %121, %cst_62 {dimension_numbers = #tpu.dot_dimension_numbers<[2], [2], [1], [1], [0, 0, 0, 1, 1, 1], [0], [0]>} : vector<2x8x4xf32>, vector<2x8x4xf32>, vector<2x8x8xf32> -> vector<2x8x8xf32>
    "tpu.trace_stop"() : () -> ()
    %cst_63 = arith.constant 5.000000e-01 : f32
    %125 = vector.broadcast %cst_63 : f32 to vector<2x8x8xf32>
    %126 = arith.mulf %124, %125 : vector<2x8x8xf32>
    %cst_64 = arith.constant dense<0xFF800000> : vector<2x8xf32>
    %127 = vector.multi_reduction <maximumf>, %126, %cst_64 [2] : vector<2x8x8xf32> to vector<2x8xf32>
    %128 = vector.shape_cast %127 : vector<2x8xf32> to vector<2x8x1xf32>
    %129 = vector.broadcast %128 : vector<2x8x1xf32> to vector<2x8x8xf32>
    %130 = arith.subf %126, %129 : vector<2x8x8xf32>
    %131 = math.exp %130 : vector<2x8x8xf32>
    %cst_65 = arith.constant dense<0.000000e+00> : vector<2x8xf32>
    %132 = vector.multi_reduction <add>, %131, %cst_65 [2] : vector<2x8x8xf32> to vector<2x8xf32>
    %133 = vector.shape_cast %132 : vector<2x8xf32> to vector<2x8x1xf32>
    %134 = vector.broadcast %133 : vector<2x8x1xf32> to vector<2x8x8xf32>
    %135 = arith.divf %131, %134 : vector<2x8x8xf32>
    "tpu.trace_start"() <{level = 10 : i32, message = "blm,bmd->bld"}> : () -> ()
    %cst_66 = arith.constant dense<0.000000e+00> : vector<2x8x4xf32>
    %136 = tpu.matmul %135, %123, %cst_66 {dimension_numbers = #tpu.dot_dimension_numbers<[2], [1], [1], [2], [0, 0, 0, 1, 1, 2], [0], [0]>} : vector<2x8x8xf32>, vector<2x8x4xf32>, vector<2x8x4xf32> -> vector<2x8x4xf32>
    "tpu.trace_stop"() : () -> ()
    %137 = vector.shape_cast %136 : vector<2x8x4xf32> to vector<16x4xf32>
    %c0_67 = arith.constant 0 : index
    %c16_68 = arith.constant 16 : index
    %138 = vector.load %arg17[%c0_67, %c16_68] : memref<16x32xf32, #tpu.memory_space<vmem>>, vector<16x4xf32>
    tpu.vector_store %arg17[%c0_67, %c16_68], %137 {strides = array<i32>} : memref<16x32xf32, #tpu.memory_space<vmem>>, vector<16x4xf32>,
    %c0_69 = arith.constant 0 : index
    %c20 = arith.constant 20 : index
    %139 = vector.load %arg16[%c0_69, %c20] : memref<16x96xf32, #tpu.memory_space<vmem>>, vector<16x4xf32>
    %140 = vector.shape_cast %139 : vector<16x4xf32> to vector<2x8x4xf32>
    %c0_70 = arith.constant 0 : index
    %c52 = arith.constant 52 : index
    %141 = vector.load %arg16[%c0_70, %c52] : memref<16x96xf32, #tpu.memory_space<vmem>>, vector<16x4xf32>
    %142 = vector.shape_cast %141 : vector<16x4xf32> to vector<2x8x4xf32>
    %c0_71 = arith.constant 0 : index
    %c84 = arith.constant 84 : index
    %143 = vector.load %arg16[%c0_71, %c84] : memref<16x96xf32, #tpu.memory_space<vmem>>, vector<16x4xf32>
    %144 = vector.shape_cast %143 : vector<16x4xf32> to vector<2x8x4xf32>
    "tpu.trace_start"() <{level = 10 : i32, message = "bld,bmd->blm"}> : () -> ()
    %cst_72 = arith.constant dense<0.000000e+00> : vector<2x8x8xf32>
    %145 = tpu.matmul %140, %142, %cst_72 {dimension_numbers = #tpu.dot_dimension_numbers<[2], [2], [1], [1], [0, 0, 0, 1, 1, 1], [0], [0]>} : vector<2x8x4xf32>, vector<2x8x4xf32>, vector<2x8x8xf32> -> vector<2x8x8xf32>
    "tpu.trace_stop"() : () -> ()
    %cst_73 = arith.constant 5.000000e-01 : f32
    %146 = vector.broadcast %cst_73 : f32 to vector<2x8x8xf32>
    %147 = arith.mulf %145, %146 : vector<2x8x8xf32>
    %cst_74 = arith.constant dense<0xFF800000> : vector<2x8xf32>
    %148 = vector.multi_reduction <maximumf>, %147, %cst_74 [2] : vector<2x8x8xf32> to vector<2x8xf32>
    %149 = vector.shape_cast %148 : vector<2x8xf32> to vector<2x8x1xf32>
    %150 = vector.broadcast %149 : vector<2x8x1xf32> to vector<2x8x8xf32>
    %151 = arith.subf %147, %150 : vector<2x8x8xf32>
    %152 = math.exp %151 : vector<2x8x8xf32>
    %cst_75 = arith.constant dense<0.000000e+00> : vector<2x8xf32>
    %153 = vector.multi_reduction <add>, %152, %cst_75 [2] : vector<2x8x8xf32> to vector<2x8xf32>
    %154 = vector.shape_cast %153 : vector<2x8xf32> to vector<2x8x1xf32>
    %155 = vector.broadcast %154 : vector<2x8x1xf32> to vector<2x8x8xf32>
    %156 = arith.divf %152, %155 : vector<2x8x8xf32>
    "tpu.trace_start"() <{level = 10 : i32, message = "blm,bmd->bld"}> : () -> ()
    %cst_76 = arith.constant dense<0.000000e+00> : vector<2x8x4xf32>
    %157 = tpu.matmul %156, %144, %cst_76 {dimension_numbers = #tpu.dot_dimension_numbers<[2], [1], [1], [2], [0, 0, 0, 1, 1, 2], [0], [0]>} : vector<2x8x8xf32>, vector<2x8x4xf32>, vector<2x8x4xf32> -> vector<2x8x4xf32>
    "tpu.trace_stop"() : () -> ()
    %158 = vector.shape_cast %157 : vector<2x8x4xf32> to vector<16x4xf32>
    %c0_77 = arith.constant 0 : index
    %c20_78 = arith.constant 20 : index
    %159 = vector.load %arg17[%c0_77, %c20_78] : memref<16x32xf32, #tpu.memory_space<vmem>>, vector<16x4xf32>
    tpu.vector_store %arg17[%c0_77, %c20_78], %158 {strides = array<i32>} : memref<16x32xf32, #tpu.memory_space<vmem>>, vector<16x4xf32>,
    %c0_79 = arith.constant 0 : index
    %c24 = arith.constant 24 : index
    %160 = vector.load %arg16[%c0_79, %c24] : memref<16x96xf32, #tpu.memory_space<vmem>>, vector<16x4xf32>
    %161 = vector.shape_cast %160 : vector<16x4xf32> to vector<2x8x4xf32>
    %c0_80 = arith.constant 0 : index
    %c56 = arith.constant 56 : index
    %162 = vector.load %arg16[%c0_80, %c56] : memref<16x96xf32, #tpu.memory_space<vmem>>, vector<16x4xf32>
    %163 = vector.shape_cast %162 : vector<16x4xf32> to vector<2x8x4xf32>
    %c0_81 = arith.constant 0 : index
    %c88 = arith.constant 88 : index
    %164 = vector.load %arg16[%c0_81, %c88] : memref<16x96xf32, #tpu.memory_space<vmem>>, vector<16x4xf32>
    %165 = vector.shape_cast %164 : vector<16x4xf32> to vector<2x8x4xf32>
    "tpu.trace_start"() <{level = 10 : i32, message = "bld,bmd->blm"}> : () -> ()
    %cst_82 = arith.constant dense<0.000000e+00> : vector<2x8x8xf32>
    %166 = tpu.matmul %161, %163, %cst_82 {dimension_numbers = #tpu.dot_dimension_numbers<[2], [2], [1], [1], [0, 0, 0, 1, 1, 1], [0], [0]>} : vector<2x8x4xf32>, vector<2x8x4xf32>, vector<2x8x8xf32> -> vector<2x8x8xf32>
    "tpu.trace_stop"() : () -> ()
    %cst_83 = arith.constant 5.000000e-01 : f32
    %167 = vector.broadcast %cst_83 : f32 to vector<2x8x8xf32>
    %168 = arith.mulf %166, %167 : vector<2x8x8xf32>
    %cst_84 = arith.constant dense<0xFF800000> : vector<2x8xf32>
    %169 = vector.multi_reduction <maximumf>, %168, %cst_84 [2] : vector<2x8x8xf32> to vector<2x8xf32>
    %170 = vector.shape_cast %169 : vector<2x8xf32> to vector<2x8x1xf32>
    %171 = vector.broadcast %170 : vector<2x8x1xf32> to vector<2x8x8xf32>
    %172 = arith.subf %168, %171 : vector<2x8x8xf32>
    %173 = math.exp %172 : vector<2x8x8xf32>
    %cst_85 = arith.constant dense<0.000000e+00> : vector<2x8xf32>
    %174 = vector.multi_reduction <add>, %173, %cst_85 [2] : vector<2x8x8xf32> to vector<2x8xf32>
    %175 = vector.shape_cast %174 : vector<2x8xf32> to vector<2x8x1xf32>
    %176 = vector.broadcast %175 : vector<2x8x1xf32> to vector<2x8x8xf32>
    %177 = arith.divf %173, %176 : vector<2x8x8xf32>
    "tpu.trace_start"() <{level = 10 : i32, message = "blm,bmd->bld"}> : () -> ()
    %cst_86 = arith.constant dense<0.000000e+00> : vector<2x8x4xf32>
    %178 = tpu.matmul %177, %165, %cst_86 {dimension_numbers = #tpu.dot_dimension_numbers<[2], [1], [1], [2], [0, 0, 0, 1, 1, 2], [0], [0]>} : vector<2x8x8xf32>, vector<2x8x4xf32>, vector<2x8x4xf32> -> vector<2x8x4xf32>
    "tpu.trace_stop"() : () -> ()
    %179 = vector.shape_cast %178 : vector<2x8x4xf32> to vector<16x4xf32>
    %c0_87 = arith.constant 0 : index
    %c24_88 = arith.constant 24 : index
    %180 = vector.load %arg17[%c0_87, %c24_88] : memref<16x32xf32, #tpu.memory_space<vmem>>, vector<16x4xf32>
    tpu.vector_store %arg17[%c0_87, %c24_88], %179 {strides = array<i32>} : memref<16x32xf32, #tpu.memory_space<vmem>>, vector<16x4xf32>,
    %c0_89 = arith.constant 0 : index
    %c28 = arith.constant 28 : index
    %181 = vector.load %arg16[%c0_89, %c28] : memref<16x96xf32, #tpu.memory_space<vmem>>, vector<16x4xf32>
    %182 = vector.shape_cast %181 : vector<16x4xf32> to vector<2x8x4xf32>
    %c0_90 = arith.constant 0 : index
    %c60 = arith.constant 60 : index
    %183 = vector.load %arg16[%c0_90, %c60] : memref<16x96xf32, #tpu.memory_space<vmem>>, vector<16x4xf32>
    %184 = vector.shape_cast %183 : vector<16x4xf32> to vector<2x8x4xf32>
    %c0_91 = arith.constant 0 : index
    %c92 = arith.constant 92 : index
    %185 = vector.load %arg16[%c0_91, %c92] : memref<16x96xf32, #tpu.memory_space<vmem>>, vector<16x4xf32>
    %186 = vector.shape_cast %185 : vector<16x4xf32> to vector<2x8x4xf32>
    "tpu.trace_start"() <{level = 10 : i32, message = "bld,bmd->blm"}> : () -> ()
    %cst_92 = arith.constant dense<0.000000e+00> : vector<2x8x8xf32>
    %187 = tpu.matmul %182, %184, %cst_92 {dimension_numbers = #tpu.dot_dimension_numbers<[2], [2], [1], [1], [0, 0, 0, 1, 1, 1], [0], [0]>} : vector<2x8x4xf32>, vector<2x8x4xf32>, vector<2x8x8xf32> -> vector<2x8x8xf32>
    "tpu.trace_stop"() : () -> ()
    %cst_93 = arith.constant 5.000000e-01 : f32
    %188 = vector.broadcast %cst_93 : f32 to vector<2x8x8xf32>
    %189 = arith.mulf %187, %188 : vector<2x8x8xf32>
    %cst_94 = arith.constant dense<0xFF800000> : vector<2x8xf32>
    %190 = vector.multi_reduction <maximumf>, %189, %cst_94 [2] : vector<2x8x8xf32> to vector<2x8xf32>
    %191 = vector.shape_cast %190 : vector<2x8xf32> to vector<2x8x1xf32>
    %192 = vector.broadcast %191 : vector<2x8x1xf32> to vector<2x8x8xf32>
    %193 = arith.subf %189, %192 : vector<2x8x8xf32>
    %194 = math.exp %193 : vector<2x8x8xf32>
    %cst_95 = arith.constant dense<0.000000e+00> : vector<2x8xf32>
    %195 = vector.multi_reduction <add>, %194, %cst_95 [2] : vector<2x8x8xf32> to vector<2x8xf32>
    %196 = vector.shape_cast %195 : vector<2x8xf32> to vector<2x8x1xf32>
    %197 = vector.broadcast %196 : vector<2x8x1xf32> to vector<2x8x8xf32>
    %198 = arith.divf %194, %197 : vector<2x8x8xf32>
    "tpu.trace_start"() <{level = 10 : i32, message = "blm,bmd->bld"}> : () -> ()
    %cst_96 = arith.constant dense<0.000000e+00> : vector<2x8x4xf32>
    %199 = tpu.matmul %198, %186, %cst_96 {dimension_numbers = #tpu.dot_dimension_numbers<[2], [1], [1], [2], [0, 0, 0, 1, 1, 2], [0], [0]>} : vector<2x8x8xf32>, vector<2x8x4xf32>, vector<2x8x4xf32> -> vector<2x8x4xf32>
    "tpu.trace_stop"() : () -> ()
    %200 = vector.shape_cast %199 : vector<2x8x4xf32> to vector<16x4xf32>
    %c0_97 = arith.constant 0 : index
    %c28_98 = arith.constant 28 : index
    %201 = vector.load %arg17[%c0_97, %c28_98] : memref<16x32xf32, #tpu.memory_space<vmem>>, vector<16x4xf32>
    tpu.vector_store %arg17[%c0_97, %c28_98], %200 {strides = array<i32>} : memref<16x32xf32, #tpu.memory_space<vmem>>, vector<16x4xf32>,
    %c0_99 = arith.constant 0 : index
    %c0_100 = arith.constant 0 : index
    %202 = vector.load %arg17[%c0_99, %c0_100] : memref<16x32xf32, #tpu.memory_space<vmem>>, vector<16x32xf32>
    %c0_101 = arith.constant 0 : index
    %c0_102 = arith.constant 0 : index
    %203 = vector.load %arg7[%c0_101, %c0_102] : memref<32x32xf32, #tpu.memory_space<vmem>>, vector<32x32xf32>
    %cst_103 = arith.constant dense<0.000000e+00> : vector<16x32xf32>
    %204 = tpu.matmul %202, %203, %cst_103 {dimension_numbers = #tpu.dot_dimension_numbers<[1], [0], [0], [1], [0, 0, 1, 1], [], []>} : vector<16x32xf32>, vector<32x32xf32>, vector<16x32xf32> -> vector<16x32xf32>
    %c0_104 = arith.constant 0 : index
    %c0_105 = arith.constant 0 : index
    %205 = vector.load %arg8[%c0_104, %c0_105] : memref<1x32xf32, #tpu.memory_space<vmem>>, vector<1x32xf32>
    %206 = vector.broadcast %205 : vector<1x32xf32> to vector<16x32xf32>
    %207 = arith.addf %204, %206 : vector<16x32xf32>
    %208 = vector.broadcast %2 : vector<16x1xf32> to vector<16x32xf32>
    %209 = arith.mulf %208, %207 : vector<16x32xf32>
    %210 = arith.addf %0, %209 : vector<16x32xf32>
    %c0_106 = arith.constant 0 : index
    %c0_107 = arith.constant 0 : index
    %211 = vector.load %arg9[%c0_106, %c0_107] : memref<1x32xf32, #tpu.memory_space<vmem>>, vector<1x32xf32>
    %c0_108 = arith.constant 0 : index
    %c0_109 = arith.constant 0 : index
    %212 = vector.load %arg10[%c0_108, %c0_109] : memref<1x32xf32, #tpu.memory_space<vmem>>, vector<1x32xf32>
    %cst_110 = arith.constant dense<0.000000e+00> : vector<16xf32>
    %213 = vector.multi_reduction <add>, %210, %cst_110 [1] : vector<16x32xf32> to vector<16xf32>
    %214 = vector.shape_cast %213 : vector<16xf32> to vector<16x1xf32>
    %cst_111 = arith.constant 3.200000e+01 : f32
    %215 = vector.broadcast %cst_111 : f32 to vector<16x1xf32>
    %216 = arith.divf %214, %215 : vector<16x1xf32>
    %217 = arith.mulf %210, %210 : vector<16x32xf32>
    %cst_112 = arith.constant dense<0.000000e+00> : vector<16xf32>
    %218 = vector.multi_reduction <add>, %217, %cst_112 [1] : vector<16x32xf32> to vector<16xf32>
    %219 = vector.shape_cast %218 : vector<16xf32> to vector<16x1xf32>
    %cst_113 = arith.constant 3.200000e+01 : f32
    %220 = vector.broadcast %cst_113 : f32 to vector<16x1xf32>
    %221 = arith.divf %219, %220 : vector<16x1xf32>
    %222 = arith.mulf %216, %216 : vector<16x1xf32>
    %223 = arith.subf %221, %222 : vector<16x1xf32>
    %224 = vector.broadcast %216 : vector<16x1xf32> to vector<16x32xf32>
    %225 = arith.subf %210, %224 : vector<16x32xf32>
    %cst_114 = arith.constant 9.99999974E-6 : f32
    %226 = vector.broadcast %cst_114 : f32 to vector<16x1xf32>
    %227 = arith.addf %223, %226 : vector<16x1xf32>
    %228 = math.rsqrt %227 : vector<16x1xf32>
    %229 = vector.broadcast %228 : vector<16x1xf32> to vector<16x32xf32>
    %230 = arith.mulf %225, %229 : vector<16x32xf32>
    %231 = vector.broadcast %211 : vector<1x32xf32> to vector<16x32xf32>
    %232 = arith.mulf %230, %231 : vector<16x32xf32>
    %233 = vector.broadcast %212 : vector<1x32xf32> to vector<16x32xf32>
    %234 = arith.addf %232, %233 : vector<16x32xf32>
    %c0_115 = arith.constant 0 : index
    %c0_116 = arith.constant 0 : index
    %235 = vector.load %arg11[%c0_115, %c0_116] : memref<32x128xf32, #tpu.memory_space<vmem>>, vector<32x128xf32>
    %cst_117 = arith.constant dense<0.000000e+00> : vector<16x128xf32>
    %236 = tpu.matmul %234, %235, %cst_117 {dimension_numbers = #tpu.dot_dimension_numbers<[1], [0], [0], [1], [0, 0, 1, 1], [], []>} : vector<16x32xf32>, vector<32x128xf32>, vector<16x128xf32> -> vector<16x128xf32>
    %c0_118 = arith.constant 0 : index
    %c0_119 = arith.constant 0 : index
    %237 = vector.load %arg12[%c0_118, %c0_119] : memref<1x128xf32, #tpu.memory_space<vmem>>, vector<1x128xf32>
    %238 = vector.broadcast %237 : vector<1x128xf32> to vector<16x128xf32>
    %239 = arith.addf %236, %238 : vector<16x128xf32>
    %240 = arith.mulf %239, %239 : vector<16x128xf32>
    %241 = arith.mulf %239, %240 : vector<16x128xf32>
    %cst_120 = arith.constant 4.471500e-02 : f32
    %242 = vector.broadcast %cst_120 : f32 to vector<16x128xf32>
    %243 = arith.mulf %242, %241 : vector<16x128xf32>
    %244 = arith.addf %239, %243 : vector<16x128xf32>
    %cst_121 = arith.constant 0.797884583 : f32
    %245 = vector.broadcast %cst_121 : f32 to vector<16x128xf32>
    %246 = arith.mulf %245, %244 : vector<16x128xf32>
    %247 = math.tanh %246 : vector<16x128xf32>
    %cst_122 = arith.constant 1.000000e+00 : f32
    %248 = vector.broadcast %cst_122 : f32 to vector<16x128xf32>
    %249 = arith.addf %248, %247 : vector<16x128xf32>
    %cst_123 = arith.constant 5.000000e-01 : f32
    %250 = vector.broadcast %cst_123 : f32 to vector<16x128xf32>
    %251 = arith.mulf %250, %249 : vector<16x128xf32>
    %252 = arith.mulf %239, %251 : vector<16x128xf32>
    %c0_124 = arith.constant 0 : index
    %c0_125 = arith.constant 0 : index
    %253 = vector.load %arg13[%c0_124, %c0_125] : memref<128x32xf32, #tpu.memory_space<vmem>>, vector<128x32xf32>
    %cst_126 = arith.constant dense<0.000000e+00> : vector<16x32xf32>
    %254 = tpu.matmul %252, %253, %cst_126 {dimension_numbers = #tpu.dot_dimension_numbers<[1], [0], [0], [1], [0, 0, 1, 1], [], []>} : vector<16x128xf32>, vector<128x32xf32>, vector<16x32xf32> -> vector<16x32xf32>
    %c0_127 = arith.constant 0 : index
    %c0_128 = arith.constant 0 : index
    %255 = vector.load %arg14[%c0_127, %c0_128] : memref<1x32xf32, #tpu.memory_space<vmem>>, vector<1x32xf32>
    %256 = vector.broadcast %255 : vector<1x32xf32> to vector<16x32xf32>
    %257 = arith.addf %254, %256 : vector<16x32xf32>
    %258 = vector.broadcast %3 : vector<16x1xf32> to vector<16x32xf32>
    %259 = arith.mulf %258, %257 : vector<16x32xf32>
    %260 = arith.addf %210, %259 : vector<16x32xf32>
    %c0_129 = arith.constant 0 : index
    %c0_130 = arith.constant 0 : index
    %261 = vector.load %arg15[%c0_129, %c0_130] : memref<16x32xf32, #tpu.memory_space<vmem>>, vector<16x32xf32>
    tpu.vector_store %arg15[%c0_129, %c0_130], %260 {strides = array<i32>} : memref<16x32xf32, #tpu.memory_space<vmem>>, vector<16x32xf32>,
    return
  }
  func.func @transform_0(%arg0: i32) -> (i32, i32) {
    %c0_i32 = arith.constant 0 : i32
    %c0_i32_0 = arith.constant 0 : i32
    return %arg0, %c0_i32 : i32, i32
  }
  func.func @transform_1(%arg0: i32) -> (i32, i32) {
    %c0_i32 = arith.constant 0 : i32
    %c0_i32_0 = arith.constant 0 : i32
    return %arg0, %c0_i32 : i32, i32
  }
  func.func @transform_2(%arg0: i32) -> (i32, i32) {
    %c0_i32 = arith.constant 0 : i32
    %c0_i32_0 = arith.constant 0 : i32
    %c0_i32_1 = arith.constant 0 : i32
    return %c0_i32, %c0_i32_0 : i32, i32
  }
  func.func @transform_3(%arg0: i32) -> (i32, i32) {
    %c0_i32 = arith.constant 0 : i32
    %c0_i32_0 = arith.constant 0 : i32
    %c0_i32_1 = arith.constant 0 : i32
    return %c0_i32, %c0_i32_0 : i32, i32
  }
  func.func @transform_4(%arg0: i32) -> (i32, i32) {
    %c0_i32 = arith.constant 0 : i32
    %c0_i32_0 = arith.constant 0 : i32
    %c0_i32_1 = arith.constant 0 : i32
    return %c0_i32, %c0_i32_0 : i32, i32
  }
  func.func @transform_5(%arg0: i32) -> (i32, i32) {
    %c0_i32 = arith.constant 0 : i32
    %c0_i32_0 = arith.constant 0 : i32
    %c0_i32_1 = arith.constant 0 : i32
    return %c0_i32, %c0_i32_0 : i32, i32
  }
  func.func @transform_6(%arg0: i32) -> (i32, i32) {
    %c0_i32 = arith.constant 0 : i32
    %c0_i32_0 = arith.constant 0 : i32
    %c0_i32_1 = arith.constant 0 : i32
    return %c0_i32, %c0_i32_0 : i32, i32
  }
  func.func @transform_7(%arg0: i32) -> (i32, i32) {
    %c0_i32 = arith.constant 0 : i32
    %c0_i32_0 = arith.constant 0 : i32
    %c0_i32_1 = arith.constant 0 : i32
    return %c0_i32, %c0_i32_0 : i32, i32
  }
  func.func @transform_8(%arg0: i32) -> (i32, i32) {
    %c0_i32 = arith.constant 0 : i32
    %c0_i32_0 = arith.constant 0 : i32
    %c0_i32_1 = arith.constant 0 : i32
    return %c0_i32, %c0_i32_0 : i32, i32
  }
  func.func @transform_9(%arg0: i32) -> (i32, i32) {
    %c0_i32 = arith.constant 0 : i32
    %c0_i32_0 = arith.constant 0 : i32
    %c0_i32_1 = arith.constant 0 : i32
    return %c0_i32, %c0_i32_0 : i32, i32
  }
  func.func @transform_10(%arg0: i32) -> (i32, i32) {
    %c0_i32 = arith.constant 0 : i32
    %c0_i32_0 = arith.constant 0 : i32
    %c0_i32_1 = arith.constant 0 : i32
    return %c0_i32, %c0_i32_0 : i32, i32
  }
  func.func @transform_11(%arg0: i32) -> (i32, i32) {
    %c0_i32 = arith.constant 0 : i32
    %c0_i32_0 = arith.constant 0 : i32
    %c0_i32_1 = arith.constant 0 : i32
    return %c0_i32, %c0_i32_0 : i32, i32
  }
  func.func @transform_12(%arg0: i32) -> (i32, i32) {
    %c0_i32 = arith.constant 0 : i32
    %c0_i32_0 = arith.constant 0 : i32
    %c0_i32_1 = arith.constant 0 : i32
    return %c0_i32, %c0_i32_0 : i32, i32
  }
  func.func @transform_13(%arg0: i32) -> (i32, i32) {
    %c0_i32 = arith.constant 0 : i32
    %c0_i32_0 = arith.constant 0 : i32
    %c0_i32_1 = arith.constant 0 : i32
    return %c0_i32, %c0_i32_0 : i32, i32
  }
  func.func @transform_14(%arg0: i32) -> (i32, i32) {
    %c0_i32 = arith.constant 0 : i32
    %c0_i32_0 = arith.constant 0 : i32
    return %arg0, %c0_i32 : i32, i32
  }
}

</mosaic_0001>

<llo_original>
// kernel: tpu_custom_call.1
$region0: #{tpu_custom_call.1}
  #allocation0 [shape = 'u32[]', space=smem, size = 0x4, offset = 0x4, fixed_abs, tag = 'smem constant byte address 0x4 - core index']
  #allocation1 [shape = 'u32[72,128]{1,0:T(1,128)}', space=vmem, size = 0x9000, scoped, tag = 'internal scratch']
  #allocation2 [shape = 'f32[16,96]{1,0:T(8,128)}', space=vmem, size = 0x2000, scoped, tag = 'scratch operand']
  #allocation3 [shape = 'f32[16,32]{1,0:T(8,128)}', space=vmem, size = 0x2000, scoped, tag = 'scratch operand']
  %s0 = inlined_call_operand.vmem [shape: f32[16,32], index: 0, kind: input, shape index: {}]
  %s1 = inlined_call_operand.vmem [shape: f32[16,2], index: 1, kind: input, shape index: {}]
  %s2 = inlined_call_operand.vmem [shape: f32[1,32], index: 2, kind: input, shape index: {}]
  %s3 = inlined_call_operand.vmem [shape: f32[1,32], index: 3, kind: input, shape index: {}]
  %s4 = inlined_call_operand.vmem [shape: f32[32,96], index: 4, kind: input, shape index: {}]
  %s5 = inlined_call_operand.vmem [shape: f32[1,96], index: 5, kind: input, shape index: {}]
  %s6 = inlined_call_operand.vmem [shape: f32[32,32], index: 6, kind: input, shape index: {}]
  %s7 = inlined_call_operand.vmem [shape: f32[1,32], index: 7, kind: input, shape index: {}]
  %s8 = inlined_call_operand.vmem [shape: f32[1,32], index: 8, kind: input, shape index: {}]
  %s9 = inlined_call_operand.vmem [shape: f32[1,32], index: 9, kind: input, shape index: {}]
  %s10 = inlined_call_operand.vmem [shape: f32[32,128], index: 10, kind: input, shape index: {}]
  %s11 = inlined_call_operand.vmem [shape: f32[1,128], index: 11, kind: input, shape index: {}]
  %s12 = inlined_call_operand.vmem [shape: f32[128,32], index: 12, kind: input, shape index: {}]
  %s13 = inlined_call_operand.vmem [shape: f32[1,32], index: 13, kind: input, shape index: {}]
  %s14 = inlined_call_operand.hbm [shape: f32[16,32], index: 14, kind: output, shape index: {}]
  %s15 = sld [smem:[#allocation0]]
  $region66: #{tpu_custom_call.1} parent=0
    _
  %s17 = ssub.s32 1, %s15
  %s18 = scalar_select 0, %s17, %s15
  $region1: #{tpu_custom_call.1} parent=0
    #allocation4 [shape = 'u8[8192]{0}', space=vmem, size = 0x2000, scoped, tag = 'output window, operand 0, single buffered']
    #allocation5 [shape = 's32[1]{0}', space=sflag, size = 0x4, scoped, tag = 'scoped memory for tpu_custom_call.1']
    %19 = vsyncpa [#allocation5], 0
    // Predicated region
    $region2: #{tpu_custom_call.1} parent=1 // pred_check
      _
    $region3: #{tpu_custom_call.1} parent=1 // pred_check_branch
      %21 = sbr.rel (0) target = $region5
    $region4: #{tpu_custom_call.1} parent=1 // pred_region
      _
    $region5: #{tpu_custom_call.1} parent=1 // pred_fallthru
      _
    // Predicated region
    $region6: #{tpu_custom_call.1} parent=1 // pred_check
      _
    $region7: #{tpu_custom_call.1} parent=1 // pred_check_branch
      %23 = sbr.rel (0) target = $region9
    $region8: #{tpu_custom_call.1} parent=1 // pred_region
      _
    $region9: #{tpu_custom_call.1} parent=1 // pred_fallthru
      _
    // Predicated region
    $region10: #{tpu_custom_call.1} parent=1 // pred_check
      _
    $region11: #{tpu_custom_call.1} parent=1 // pred_check_branch
      %25 = sbr.rel (0) target = $region13
    $region12: #{tpu_custom_call.1} parent=1 // pred_region
      _
    $region13: #{tpu_custom_call.1} parent=1 // pred_fallthru
      _
    // Predicated region
    $region14: #{tpu_custom_call.1} parent=1 // pred_check
      _
    $region15: #{tpu_custom_call.1} parent=1 // pred_check_branch
      %27 = sbr.rel (0) target = $region17
    $region16: #{tpu_custom_call.1} parent=1 // pred_region
      _
    $region17: #{tpu_custom_call.1} parent=1 // pred_fallthru
      _
    // Predicated region
    $region18: #{tpu_custom_call.1} parent=1 // pred_check
      _
    $region19: #{tpu_custom_call.1} parent=1 // pred_check_branch
      %29 = sbr.rel (0) target = $region21
    $region20: #{tpu_custom_call.1} parent=1 // pred_region
      _
    $region21: #{tpu_custom_call.1} parent=1 // pred_fallthru
      _
    // Predicated region
    $region22: #{tpu_custom_call.1} parent=1 // pred_check
      _
    $region23: #{tpu_custom_call.1} parent=1 // pred_check_branch
      %31 = sbr.rel (0) target = $region25
    $region24: #{tpu_custom_call.1} parent=1 // pred_region
      _
    $region25: #{tpu_custom_call.1} parent=1 // pred_fallthru
      _
    // Predicated region
    $region26: #{tpu_custom_call.1} parent=1 // pred_check
      _
    $region27: #{tpu_custom_call.1} parent=1 // pred_check_branch
      %33 = sbr.rel (0) target = $region29
    $region28: #{tpu_custom_call.1} parent=1 // pred_region
      _
    $region29: #{tpu_custom_call.1} parent=1 // pred_fallthru
      _
    // Predicated region
    $region30: #{tpu_custom_call.1} parent=1 // pred_check
      _
    $region31: #{tpu_custom_call.1} parent=1 // pred_check_branch
      %35 = sbr.rel (0) target = $region33
    $region32: #{tpu_custom_call.1} parent=1 // pred_region
      _
    $region33: #{tpu_custom_call.1} parent=1 // pred_fallthru
      _
    // Predicated region
    $region34: #{tpu_custom_call.1} parent=1 // pred_check
      _
    $region35: #{tpu_custom_call.1} parent=1 // pred_check_branch
      %37 = sbr.rel (0) target = $region37
    $region36: #{tpu_custom_call.1} parent=1 // pred_region
      _
    $region37: #{tpu_custom_call.1} parent=1 // pred_fallthru
      _
    // Predicated region
    $region38: #{tpu_custom_call.1} parent=1 // pred_check
      _
    $region39: #{tpu_custom_call.1} parent=1 // pred_check_branch
      %39 = sbr.rel (0) target = $region41
    $region40: #{tpu_custom_call.1} parent=1 // pred_region
      _
    $region41: #{tpu_custom_call.1} parent=1 // pred_fallthru
      _
    // Predicated region
    $region42: #{tpu_custom_call.1} parent=1 // pred_check
      _
    $region43: #{tpu_custom_call.1} parent=1 // pred_check_branch
      %41 = sbr.rel (0) target = $region45
    $region44: #{tpu_custom_call.1} parent=1 // pred_region
      _
    $region45: #{tpu_custom_call.1} parent=1 // pred_fallthru
      _
    // Predicated region
    $region46: #{tpu_custom_call.1} parent=1 // pred_check
      _
    $region47: #{tpu_custom_call.1} parent=1 // pred_check_branch
      %43 = sbr.rel (0) target = $region49
    $region48: #{tpu_custom_call.1} parent=1 // pred_region
      _
    $region49: #{tpu_custom_call.1} parent=1 // pred_fallthru
      _
    // Predicated region
    $region50: #{tpu_custom_call.1} parent=1 // pred_check
      _
    $region51: #{tpu_custom_call.1} parent=1 // pred_check_branch
      %45 = sbr.rel (0) target = $region53
    $region52: #{tpu_custom_call.1} parent=1 // pred_region
      _
    $region53: #{tpu_custom_call.1} parent=1 // pred_fallthru
      _
    // Predicated region
    $region54: #{tpu_custom_call.1} parent=1 // pred_check
      _
    $region55: #{tpu_custom_call.1} parent=1 // pred_check_branch
      %47 = sbr.rel (0) target = $region57
    $region56: #{tpu_custom_call.1} parent=1 // pred_region
      _
    $region57: #{tpu_custom_call.1} parent=1 // pred_fallthru
      _
    %v48 = vld [vmem:[%s0] sm:$0xff]
    %v49 = vld [vmem:[%s0 + $0x8] sm:$0xff]
    %v50 = vld [vmem:[%s1] sm:$0xff]
    %v51 = vld [vmem:[%s1 + $0x8] sm:$0xff]
    %v52 = vld [vmem:[%s2] sm:$0x1]
    %v53 = vld [vmem:[%s3] sm:$0x1]
    %vm54 = vcmask 261120
    %v55 = vsel %vm54, %v48, 0.0
    %56 = vadd.xlane.f32.xlu0 %v55
    %v57 = vpop.xlane.xlu0 %56
    %v58 = vsel %vm54, %v49, 0.0
    %59 = vadd.xlane.f32.xlu0 %v58
    %v60 = vpop.xlane.xlu0 %59
    %v61 = vrcp.pop 32.0
    %v62 = vmul.f32 32.0, %v61
    %v63 = vsub.f32 1.0, %v62
    %v64 = vmul.f32 %v61, %v63
    %v65 = vadd.f32 %v61, %v64
    %vm66 = vweird.f32 %v61
    %v67 = vsel %vm66, %v61, %v65
    %v68 = vmul.f32 %v57, %v67
    %v69 = vmul.f32 %v60, %v67
    %v70 = vmul.f32 %v48, %v48
    %v71 = vmul.f32 %v49, %v49
    %v72 = vsel %vm54, %v70, 0.0
    %73 = vadd.xlane.f32.xlu0 %v72
    %v74 = vpop.xlane.xlu0 %73
    %v75 = vsel %vm54, %v71, 0.0
    %76 = vadd.xlane.f32.xlu0 %v75
    %v77 = vpop.xlane.xlu0 %76
    %v78 = vmul.f32 %v74, %v67
    %v79 = vmul.f32 %v77, %v67
    %v80 = vmul.f32 %v68, %v68
    %v81 = vmul.f32 %v69, %v69
    %v82 = vsub.f32 %v78, %v80
    %v83 = vsub.f32 %v79, %v81
    %v84 = vsub.f32 %v48, %v68
    %v85 = vsub.f32 %v49, %v69
    %v86 = vadd.f32 %v82, 1e-05
    %v87 = vadd.f32 %v83, 1e-05
    %v88 = vrsqrt.pop %v86
    %v89 = vmul.f32 %v88, %v86
    %v90 = vmul.f32 %v89, %v88
    %v91 = vmul.f32 0.5, %v90
    %v92 = vsub.f32 1.5, %v91
    %v93 = vmul.f32 %v88, %v92
    %vm94 = vweird.f32 %v86
    %vm95 = vweird.f32 %v88
    %vm96 = vmor %vm94, %vm95
    %v97 = vsel %vm96, %v88, %v93
    %v98 = vrsqrt.pop %v87
    %v99 = vmul.f32 %v98, %v87
    %v100 = vmul.f32 %v99, %v98
    %v101 = vmul.f32 0.5, %v100
    %v102 = vsub.f32 1.5, %v101
    %v103 = vmul.f32 %v98, %v102
    %vm104 = vweird.f32 %v87
    %vm105 = vweird.f32 %v98
    %vm106 = vmor %vm104, %vm105
    %v107 = vsel %vm106, %v98, %v103
    %v108 = vmul.f32 %v84, %v97
    %v109 = vmul.f32 %v85, %v107
    %v111 = vperm.slane %v52, 0
    %v113 = vmul.f32 %v108, %v111
    %v114 = vmul.f32 %v109, %v111
    %v116 = vperm.slane %v53, 0
    %v118 = vadd.f32 %v113, %v116
    %v119 = vadd.f32 %v114, %v116
    %v120 = vld [vmem:[%s4] sm:$0xff]
    %v121 = vld [vmem:[%s4 + $0x8] sm:$0xff]
    %v122 = vld [vmem:[%s4 + $0x10] sm:$0xff]
    %v123 = vld [vmem:[%s4 + $0x18] sm:$0xff]
    %v124 = vld [vmem:[%s5] sm:$0x1]
    %v126 = vperm.slane %v124, 0
    %v129 = vsel %vm54, %v118, 0
    %v132 = vsel %vm54, %v119, 0
    %134 = vmatpush.msra.mxu0 0.0
    %135 = vmatpush.msra.mxu0 0.0
    %136 = vmatpush.msra.mxu0 0.0
    %137 = vmatpush.msra.mxu0 0.0
    %138 = vmatpush.msra.mxu0 0.0
    %139 = vmatpush.msra.mxu0 0.0
    %140 = vmatpush.msra.mxu0 0.0
    %141 = vmatpush.msra.mxu0 0.0
    %142 = vmatpush.msra.mxu0 0.0
    %143 = vmatpush.msra.mxu0 0.0
    %144 = vmatpush.msra.mxu0 0.0
    %145 = vmatpush.msra.mxu0 0.0
    %146 = vmatpush.msra.mxu0 %v123
    %147 = vmatpush.msra.mxu0 %v122
    %148 = vmatpush.msra.mxu0 %v121
    %149 = vmatpush.msra.mxu0 %v120
    %150 = vmatmul.f32.gmra.mxu0 %v129
    %v151 = vpop.f32.mrf.mxu0
    %v152 = vadd.f32 %v126, %v151
    %153 = vmatmul.f32.gmra.mxu0 %v132
    %v154 = vpop.f32.mrf.mxu0
    %v155 = vadd.f32 %v126, %v154
    %156 = vdwg.mxu0
    %vm157 = vcmask 785408
    %158 = vst.msk [vmem:[#allocation2] sm:$0xff] %vm157, %v152
    %159 = vst.msk [vmem:[#allocation2 + $0x8] sm:$0xff] %vm157, %v155
    %v160 = vld [vmem:[#allocation2] sm:$0xff]
    %v161 = vld [vmem:[#allocation2 + $0x8] sm:$0xff]
    %163 = vrot.lane.b32.xlu0 %v160, 96
    %v164 = vpop.permute.xlu0 %163
    %vm165 = vcmask 31744
    %v166 = vsel %vm165, %v160, 0
    %v168 = vsel %vm165, %v164, 0
    %170 = vmatpush.xpose.msra.mxu0 0.0
    %171 = vmatpush.xpose.msra.mxu0 0.0
    %172 = vmatpush.xpose.msra.mxu0 0.0
    %173 = vmatpush.xpose.msra.mxu0 0.0
    %174 = vmatpush.xpose.msra.mxu0 0.0
    %175 = vmatpush.xpose.msra.mxu0 0.0
    %176 = vmatpush.xpose.msra.mxu0 0.0
    %177 = vmatpush.xpose.msra.mxu0 0.0
    %178 = vmatpush.xpose.msra.mxu0 0.0
    %179 = vmatpush.xpose.msra.mxu0 0.0
    %180 = vmatpush.xpose.msra.mxu0 0.0
    %181 = vmatpush.xpose.msra.mxu0 0.0
    %182 = vmatpush.xpose.msra.mxu0 0.0
    %183 = vmatpush.xpose.msra.mxu0 0.0
    %184 = vmatpush.xpose.msra.mxu0 0.0
    %185 = vmatpush.xpose.msra.mxu0 %v168
    %186 = vmatmul.f32.gmra.mxu0 %v166
    %v187 = vpop.f32.mrf.mxu0
    %v188 = vadd.f32 0.0, %v187
    %189 = vdwg.mxu0
    %191 = vrot.lane.b32.xlu0 %v161, 96
    %v192 = vpop.permute.xlu0 %191
    %v193 = vsel %vm165, %v161, 0
    %v195 = vsel %vm165, %v192, 0
    %197 = vmatpush.xpose.msra.mxu0 0.0
    %198 = vmatpush.xpose.msra.mxu0 0.0
    %199 = vmatpush.xpose.msra.mxu0 0.0
    %200 = vmatpush.xpose.msra.mxu0 0.0
    %201 = vmatpush.xpose.msra.mxu0 0.0
    %202 = vmatpush.xpose.msra.mxu0 0.0
    %203 = vmatpush.xpose.msra.mxu0 0.0
    %204 = vmatpush.xpose.msra.mxu0 0.0
    %205 = vmatpush.xpose.msra.mxu0 0.0
    %206 = vmatpush.xpose.msra.mxu0 0.0
    %207 = vmatpush.xpose.msra.mxu0 0.0
    %208 = vmatpush.xpose.msra.mxu0 0.0
    %209 = vmatpush.xpose.msra.mxu0 0.0
    %210 = vmatpush.xpose.msra.mxu0 0.0
    %211 = vmatpush.xpose.msra.mxu0 0.0
    %212 = vmatpush.xpose.msra.mxu0 %v195
    %213 = vmatmul.f32.gmra.mxu0 %v193
    %v214 = vpop.f32.mrf.mxu0
    %v215 = vadd.f32 0.0, %v214
    %216 = vdwg.mxu0
    %v217 = vmul.f32 %v188, 0.5
    %v218 = vmul.f32 %v215, 0.5
    %vm219 = vcmask 64512
    %v220 = vsel %vm219, %v217, -inf
    %221 = vmax.xlane.f32.xlu0 %v220
    %v222 = vpop.xlane.xlu0 %221
    %v223 = vsel %vm219, %v218, -inf
    %224 = vmax.xlane.f32.xlu0 %v223
    %v225 = vpop.xlane.xlu0 %224
    %v226 = vsub.f32 %v217, %v222
    %v227 = vsub.f32 %v218, %v225
    %v228 = vmul.f32 %v226, 1.442695
    %v229 = vpow.pop %v228
    %v230 = vmul.f32 %v227, 1.442695
    %v231 = vpow.pop %v230
    %v232 = vsel %vm219, %v229, 0.0
    %233 = vadd.xlane.f32.xlu0 %v232
    %v234 = vpop.xlane.xlu0 %233
    %v235 = vsel %vm219, %v231, 0.0
    %236 = vadd.xlane.f32.xlu0 %v235
    %v237 = vpop.xlane.xlu0 %236
    %v238 = vrcp.pop %v234
    %v239 = vmul.f32 %v234, %v238
    %v240 = vsub.f32 1.0, %v239
    %v241 = vmul.f32 %v238, %v240
    %v242 = vadd.f32 %v238, %v241
    %vm243 = vweird.f32 %v234
    %vm244 = vweird.f32 %v238
    %vm245 = vmor %vm243, %vm244
    %v246 = vsel %vm245, %v238, %v242
    %v247 = vand.u32 2147483647, %v234
    %vm248 = vcmp.eq.f32.partialorder %v247, 8.507059e+37
    %v249 = vand.u32 %v234, 2147483648
    %v250 = vor.u32 1.1754944e-38, %v249
    %v251 = vsel %vm248, %v250, %v246
    %v252 = vmul.f32 %v229, %v251
    %v253 = vrcp.pop %v237
    %v254 = vmul.f32 %v237, %v253
    %v255 = vsub.f32 1.0, %v254
    %v256 = vmul.f32 %v253, %v255
    %v257 = vadd.f32 %v253, %v256
    %vm258 = vweird.f32 %v237
    %vm259 = vweird.f32 %v253
    %vm260 = vmor %vm258, %vm259
    %v261 = vsel %vm260, %v253, %v257
    %v262 = vand.u32 2147483647, %v237
    %vm263 = vcmp.eq.f32.partialorder %v262, 8.507059e+37
    %v264 = vand.u32 %v237, 2147483648
    %v265 = vor.u32 1.1754944e-38, %v264
    %v266 = vsel %vm263, %v265, %v261
    %v267 = vmul.f32 %v231, %v266
    %268 = vrot.lane.b32.xlu0 %v160, 64
    %v269 = vpop.permute.xlu0 %268
    %v272 = vsel %vm219, %v252, 0
    %274 = vmatpush.msra.mxu0 0.0
    %275 = vmatpush.msra.mxu0 0.0
    %276 = vmatpush.msra.mxu0 0.0
    %277 = vmatpush.msra.mxu0 0.0
    %278 = vmatpush.msra.mxu0 0.0
    %279 = vmatpush.msra.mxu0 0.0
    %280 = vmatpush.msra.mxu0 0.0
    %281 = vmatpush.msra.mxu0 0.0
    %282 = vmatpush.msra.mxu0 0.0
    %283 = vmatpush.msra.mxu0 0.0
    %284 = vmatpush.msra.mxu0 0.0
    %285 = vmatpush.msra.mxu0 0.0
    %286 = vmatpush.msra.mxu0 0.0
    %287 = vmatpush.msra.mxu0 0.0
    %288 = vmatpush.msra.mxu0 0.0
    %289 = vmatpush.msra.mxu0 %v269
    %290 = vmatmul.f32.gmra.mxu0 %v272
    %v291 = vpop.f32.mrf.mxu0
    %v292 = vadd.f32 0.0, %v291
    %293 = vdwg.mxu0
    %294 = vrot.lane.b32.xlu0 %v161, 64
    %v295 = vpop.permute.xlu0 %294
    %v298 = vsel %vm219, %v267, 0
    %300 = vmatpush.msra.mxu0 0.0
    %301 = vmatpush.msra.mxu0 0.0
    %302 = vmatpush.msra.mxu0 0.0
    %303 = vmatpush.msra.mxu0 0.0
    %304 = vmatpush.msra.mxu0 0.0
    %305 = vmatpush.msra.mxu0 0.0
    %306 = vmatpush.msra.mxu0 0.0
    %307 = vmatpush.msra.mxu0 0.0
    %308 = vmatpush.msra.mxu0 0.0
    %309 = vmatpush.msra.mxu0 0.0
    %310 = vmatpush.msra.mxu0 0.0
    %311 = vmatpush.msra.mxu0 0.0
    %312 = vmatpush.msra.mxu0 0.0
    %313 = vmatpush.msra.mxu0 0.0
    %314 = vmatpush.msra.mxu0 0.0
    %315 = vmatpush.msra.mxu0 %v295
    %316 = vmatmul.f32.gmra.mxu0 %v298
    %v317 = vpop.f32.mrf.mxu0
    %v318 = vadd.f32 0.0, %v317
    %319 = vdwg.mxu0
    %320 = vst.msk [vmem:[#allocation3] sm:$0xff] %vm165, %v292
    %321 = vst.msk [vmem:[#allocation3 + $0x8] sm:$0xff] %vm165, %v318
    %v322 = vld [vmem:[#allocation2] sm:$0xff]
    %v323 = vld [vmem:[#allocation2 + $0x8] sm:$0xff]
    %325 = vrot.lane.b32.xlu0 %v322, 124
    %v326 = vpop.permute.xlu0 %325
    %327 = vrot.lane.b32.xlu0 %v322, 92
    %v328 = vpop.permute.xlu0 %327
    %v329 = vsel %vm165, %v326, 0
    %v331 = vsel %vm165, %v328, 0
    %333 = vmatpush.xpose.msra.mxu0 0.0
    %334 = vmatpush.xpose.msra.mxu0 0.0
    %335 = vmatpush.xpose.msra.mxu0 0.0
    %336 = vmatpush.xpose.msra.mxu0 0.0
    %337 = vmatpush.xpose.msra.mxu0 0.0
    %338 = vmatpush.xpose.msra.mxu0 0.0
    %339 = vmatpush.xpose.msra.mxu0 0.0
    %340 = vmatpush.xpose.msra.mxu0 0.0
    %341 = vmatpush.xpose.msra.mxu0 0.0
    %342 = vmatpush.xpose.msra.mxu0 0.0
    %343 = vmatpush.xpose.msra.mxu0 0.0
    %344 = vmatpush.xpose.msra.mxu0 0.0
    %345 = vmatpush.xpose.msra.mxu0 0.0
    %346 = vmatpush.xpose.msra.mxu0 0.0
    %347 = vmatpush.xpose.msra.mxu0 0.0
    %348 = vmatpush.xpose.msra.mxu0 %v331
    %349 = vmatmul.f32.gmra.mxu0 %v329
    %v350 = vpop.f32.mrf.mxu0
    %v351 = vadd.f32 0.0, %v350
    %352 = vdwg.mxu0
    %354 = vrot.lane.b32.xlu0 %v323, 124
    %v355 = vpop.permute.xlu0 %354
    %356 = vrot.lane.b32.xlu0 %v323, 92
    %v357 = vpop.permute.xlu0 %356
    %v358 = vsel %vm165, %v355, 0
    %v360 = vsel %vm165, %v357, 0
    %362 = vmatpush.xpose.msra.mxu0 0.0
    %363 = vmatpush.xpose.msra.mxu0 0.0
    %364 = vmatpush.xpose.msra.mxu0 0.0
    %365 = vmatpush.xpose.msra.mxu0 0.0
    %366 = vmatpush.xpose.msra.mxu0 0.0
    %367 = vmatpush.xpose.msra.mxu0 0.0
    %368 = vmatpush.xpose.msra.mxu0 0.0
    %369 = vmatpush.xpose.msra.mxu0 0.0
    %370 = vmatpush.xpose.msra.mxu0 0.0
    %371 = vmatpush.xpose.msra.mxu0 0.0
    %372 = vmatpush.xpose.msra.mxu0 0.0
    %373 = vmatpush.xpose.msra.mxu0 0.0
    %374 = vmatpush.xpose.msra.mxu0 0.0
    %375 = vmatpush.xpose.msra.mxu0 0.0
    %376 = vmatpush.xpose.msra.mxu0 0.0
    %377 = vmatpush.xpose.msra.mxu0 %v360
    %378 = vmatmul.f32.gmra.mxu0 %v358
    %v379 = vpop.f32.mrf.mxu0
    %v380 = vadd.f32 0.0, %v379
    %381 = vdwg.mxu0
    %v382 = vmul.f32 %v351, 0.5
    %v383 = vmul.f32 %v380, 0.5
    %v384 = vsel %vm219, %v382, -inf
    %385 = vmax.xlane.f32.xlu0 %v384
    %v386 = vpop.xlane.xlu0 %385
    %v387 = vsel %vm219, %v383, -inf
    %388 = vmax.xlane.f32.xlu0 %v387
    %v389 = vpop.xlane.xlu0 %388
    %v390 = vsub.f32 %v382, %v386
    %v391 = vsub.f32 %v383, %v389
    %v392 = vmul.f32 %v390, 1.442695
    %v393 = vpow.pop %v392
    %v394 = vmul.f32 %v391, 1.442695
    %v395 = vpow.pop %v394
    %v396 = vsel %vm219, %v393, 0.0
    %397 = vadd.xlane.f32.xlu0 %v396
    %v398 = vpop.xlane.xlu0 %397
    %v399 = vsel %vm219, %v395, 0.0
    %400 = vadd.xlane.f32.xlu0 %v399
    %v401 = vpop.xlane.xlu0 %400
    %v402 = vrcp.pop %v398
    %v403 = vmul.f32 %v398, %v402
    %v404 = vsub.f32 1.0, %v403
    %v405 = vmul.f32 %v402, %v404
    %v406 = vadd.f32 %v402, %v405
    %vm407 = vweird.f32 %v398
    %vm408 = vweird.f32 %v402
    %vm409 = vmor %vm407, %vm408
    %v410 = vsel %vm409, %v402, %v406
    %v411 = vand.u32 2147483647, %v398
    %vm412 = vcmp.eq.f32.partialorder %v411, 8.507059e+37
    %v413 = vand.u32 %v398, 2147483648
    %v414 = vor.u32 1.1754944e-38, %v413
    %v415 = vsel %vm412, %v414, %v410
    %v416 = vmul.f32 %v393, %v415
    %v417 = vrcp.pop %v401
    %v418 = vmul.f32 %v401, %v417
    %v419 = vsub.f32 1.0, %v418
    %v420 = vmul.f32 %v417, %v419
    %v421 = vadd.f32 %v417, %v420
    %vm422 = vweird.f32 %v401
    %vm423 = vweird.f32 %v417
    %vm424 = vmor %vm422, %vm423
    %v425 = vsel %vm424, %v417, %v421
    %v426 = vand.u32 2147483647, %v401
    %vm427 = vcmp.eq.f32.partialorder %v426, 8.507059e+37
    %v428 = vand.u32 %v401, 2147483648
    %v429 = vor.u32 1.1754944e-38, %v428
    %v430 = vsel %vm427, %v429, %v425
    %v431 = vmul.f32 %v395, %v430
    %432 = vrot.lane.b32.xlu0 %v322, 60
    %v433 = vpop.permute.xlu0 %432
    %v436 = vsel %vm219, %v416, 0
    %438 = vmatpush.msra.mxu0 0.0
    %439 = vmatpush.msra.mxu0 0.0
    %440 = vmatpush.msra.mxu0 0.0
    %441 = vmatpush.msra.mxu0 0.0
    %442 = vmatpush.msra.mxu0 0.0
    %443 = vmatpush.msra.mxu0 0.0
    %444 = vmatpush.msra.mxu0 0.0
    %445 = vmatpush.msra.mxu0 0.0
    %446 = vmatpush.msra.mxu0 0.0
    %447 = vmatpush.msra.mxu0 0.0
    %448 = vmatpush.msra.mxu0 0.0
    %449 = vmatpush.msra.mxu0 0.0
    %450 = vmatpush.msra.mxu0 0.0
    %451 = vmatpush.msra.mxu0 0.0
    %452 = vmatpush.msra.mxu0 0.0
    %453 = vmatpush.msra.mxu0 %v433
    %454 = vmatmul.f32.gmra.mxu0 %v436
    %v455 = vpop.f32.mrf.mxu0
    %v456 = vadd.f32 0.0, %v455
    %457 = vdwg.mxu0
    %458 = vrot.lane.b32.xlu0 %v323, 60
    %v459 = vpop.permute.xlu0 %458
    %v462 = vsel %vm219, %v431, 0
    %464 = vmatpush.msra.mxu0 0.0
    %465 = vmatpush.msra.mxu0 0.0
    %466 = vmatpush.msra.mxu0 0.0
    %467 = vmatpush.msra.mxu0 0.0
    %468 = vmatpush.msra.mxu0 0.0
    %469 = vmatpush.msra.mxu0 0.0
    %470 = vmatpush.msra.mxu0 0.0
    %471 = vmatpush.msra.mxu0 0.0
    %472 = vmatpush.msra.mxu0 0.0
    %473 = vmatpush.msra.mxu0 0.0
    %474 = vmatpush.msra.mxu0 0.0
    %475 = vmatpush.msra.mxu0 0.0
    %476 = vmatpush.msra.mxu0 0.0
    %477 = vmatpush.msra.mxu0 0.0
    %478 = vmatpush.msra.mxu0 0.0
    %479 = vmatpush.msra.mxu0 %v459
    %480 = vmatmul.f32.gmra.mxu0 %v462
    %v481 = vpop.f32.mrf.mxu0
    %v482 = vadd.f32 0.0, %v481
    %483 = vdwg.mxu0
    %486 = vrot.lane.b32.xlu0 %v456, 4
    %v487 = vpop.permute.xlu0 %486
    %488 = vrot.lane.b32.xlu0 %v482, 4
    %v489 = vpop.permute.xlu0 %488
    %vm492 = vcmask 64544
    %493 = vst.msk [vmem:[#allocation3] sm:$0xff] %vm492, %v487
    %494 = vst.msk [vmem:[#allocation3 + $0x8] sm:$0xff] %vm492, %v489
    %v495 = vld [vmem:[#allocation2] sm:$0xff]
    %v496 = vld [vmem:[#allocation2 + $0x8] sm:$0xff]
    %498 = vrot.lane.b32.xlu0 %v495, 120
    %v499 = vpop.permute.xlu0 %498
    %500 = vrot.lane.b32.xlu0 %v495, 88
    %v501 = vpop.permute.xlu0 %500
    %v502 = vsel %vm165, %v499, 0
    %v504 = vsel %vm165, %v501, 0
    %506 = vmatpush.xpose.msra.mxu0 0.0
    %507 = vmatpush.xpose.msra.mxu0 0.0
    %508 = vmatpush.xpose.msra.mxu0 0.0
    %509 = vmatpush.xpose.msra.mxu0 0.0
    %510 = vmatpush.xpose.msra.mxu0 0.0
    %511 = vmatpush.xpose.msra.mxu0 0.0
    %512 = vmatpush.xpose.msra.mxu0 0.0
    %513 = vmatpush.xpose.msra.mxu0 0.0
    %514 = vmatpush.xpose.msra.mxu0 0.0
    %515 = vmatpush.xpose.msra.mxu0 0.0
    %516 = vmatpush.xpose.msra.mxu0 0.0
    %517 = vmatpush.xpose.msra.mxu0 0.0
    %518 = vmatpush.xpose.msra.mxu0 0.0
    %519 = vmatpush.xpose.msra.mxu0 0.0
    %520 = vmatpush.xpose.msra.mxu0 0.0
    %521 = vmatpush.xpose.msra.mxu0 %v504
    %522 = vmatmul.f32.gmra.mxu0 %v502
    %v523 = vpop.f32.mrf.mxu0
    %v524 = vadd.f32 0.0, %v523
    %525 = vdwg.mxu0
    %527 = vrot.lane.b32.xlu0 %v496, 120
    %v528 = vpop.permute.xlu0 %527
    %529 = vrot.lane.b32.xlu0 %v496, 88
    %v530 = vpop.permute.xlu0 %529
    %v531 = vsel %vm165, %v528, 0
    %v533 = vsel %vm165, %v530, 0
    %535 = vmatpush.xpose.msra.mxu0 0.0
    %536 = vmatpush.xpose.msra.mxu0 0.0
    %537 = vmatpush.xpose.msra.mxu0 0.0
    %538 = vmatpush.xpose.msra.mxu0 0.0
    %539 = vmatpush.xpose.msra.mxu0 0.0
    %540 = vmatpush.xpose.msra.mxu0 0.0
    %541 = vmatpush.xpose.msra.mxu0 0.0
    %542 = vmatpush.xpose.msra.mxu0 0.0
    %543 = vmatpush.xpose.msra.mxu0 0.0
    %544 = vmatpush.xpose.msra.mxu0 0.0
    %545 = vmatpush.xpose.msra.mxu0 0.0
    %546 = vmatpush.xpose.msra.mxu0 0.0
    %547 = vmatpush.xpose.msra.mxu0 0.0
    %548 = vmatpush.xpose.msra.mxu0 0.0
    %549 = vmatpush.xpose.msra.mxu0 0.0
    %550 = vmatpush.xpose.msra.mxu0 %v533
    %551 = vmatmul.f32.gmra.mxu0 %v531
    %v552 = vpop.f32.mrf.mxu0
    %v553 = vadd.f32 0.0, %v552
    %554 = vdwg.mxu0
    %v555 = vmul.f32 %v524, 0.5
    %v556 = vmul.f32 %v553, 0.5
    %v557 = vsel %vm219, %v555, -inf
    %558 = vmax.xlane.f32.xlu0 %v557
    %v559 = vpop.xlane.xlu0 %558
    %v560 = vsel %vm219, %v556, -inf
    %561 = vmax.xlane.f32.xlu0 %v560
    %v562 = vpop.xlane.xlu0 %561
    %v563 = vsub.f32 %v555, %v559
    %v564 = vsub.f32 %v556, %v562
    %v565 = vmul.f32 %v563, 1.442695
    %v566 = vpow.pop %v565
    %v567 = vmul.f32 %v564, 1.442695
    %v568 = vpow.pop %v567
    %v569 = vsel %vm219, %v566, 0.0
    %570 = vadd.xlane.f32.xlu0 %v569
    %v571 = vpop.xlane.xlu0 %570
    %v572 = vsel %vm219, %v568, 0.0
    %573 = vadd.xlane.f32.xlu0 %v572
    %v574 = vpop.xlane.xlu0 %573
    %v575 = vrcp.pop %v571
    %v576 = vmul.f32 %v571, %v575
    %v577 = vsub.f32 1.0, %v576
    %v578 = vmul.f32 %v575, %v577
    %v579 = vadd.f32 %v575, %v578
    %vm580 = vweird.f32 %v571
    %vm581 = vweird.f32 %v575
    %vm582 = vmor %vm580, %vm581
    %v583 = vsel %vm582, %v575, %v579
    %v584 = vand.u32 2147483647, %v571
    %vm585 = vcmp.eq.f32.partialorder %v584, 8.507059e+37
    %v586 = vand.u32 %v571, 2147483648
    %v587 = vor.u32 1.1754944e-38, %v586
    %v588 = vsel %vm585, %v587, %v583
    %v589 = vmul.f32 %v566, %v588
    %v590 = vrcp.pop %v574
    %v591 = vmul.f32 %v574, %v590
    %v592 = vsub.f32 1.0, %v591
    %v593 = vmul.f32 %v590, %v592
    %v594 = vadd.f32 %v590, %v593
    %vm595 = vweird.f32 %v574
    %vm596 = vweird.f32 %v590
    %vm597 = vmor %vm595, %vm596
    %v598 = vsel %vm597, %v590, %v594
    %v599 = vand.u32 2147483647, %v574
    %vm600 = vcmp.eq.f32.partialorder %v599, 8.507059e+37
    %v601 = vand.u32 %v574, 2147483648
    %v602 = vor.u32 1.1754944e-38, %v601
    %v603 = vsel %vm600, %v602, %v598
    %v604 = vmul.f32 %v568, %v603
    %605 = vrot.lane.b32.xlu0 %v495, 56
    %v606 = vpop.permute.xlu0 %605
    %v609 = vsel %vm219, %v589, 0
    %611 = vmatpush.msra.mxu0 0.0
    %612 = vmatpush.msra.mxu0 0.0
    %613 = vmatpush.msra.mxu0 0.0
    %614 = vmatpush.msra.mxu0 0.0
    %615 = vmatpush.msra.mxu0 0.0
    %616 = vmatpush.msra.mxu0 0.0
    %617 = vmatpush.msra.mxu0 0.0
    %618 = vmatpush.msra.mxu0 0.0
    %619 = vmatpush.msra.mxu0 0.0
    %620 = vmatpush.msra.mxu0 0.0
    %621 = vmatpush.msra.mxu0 0.0
    %622 = vmatpush.msra.mxu0 0.0
    %623 = vmatpush.msra.mxu0 0.0
    %624 = vmatpush.msra.mxu0 0.0
    %625 = vmatpush.msra.mxu0 0.0
    %626 = vmatpush.msra.mxu0 %v606
    %627 = vmatmul.f32.gmra.mxu0 %v609
    %v628 = vpop.f32.mrf.mxu0
    %v629 = vadd.f32 0.0, %v628
    %630 = vdwg.mxu0
    %631 = vrot.lane.b32.xlu0 %v496, 56
    %v632 = vpop.permute.xlu0 %631
    %v635 = vsel %vm219, %v604, 0
    %637 = vmatpush.msra.mxu0 0.0
    %638 = vmatpush.msra.mxu0 0.0
    %639 = vmatpush.msra.mxu0 0.0
    %640 = vmatpush.msra.mxu0 0.0
    %641 = vmatpush.msra.mxu0 0.0
    %642 = vmatpush.msra.mxu0 0.0
    %643 = vmatpush.msra.mxu0 0.0
    %644 = vmatpush.msra.mxu0 0.0
    %645 = vmatpush.msra.mxu0 0.0
    %646 = vmatpush.msra.mxu0 0.0
    %647 = vmatpush.msra.mxu0 0.0
    %648 = vmatpush.msra.mxu0 0.0
    %649 = vmatpush.msra.mxu0 0.0
    %650 = vmatpush.msra.mxu0 0.0
    %651 = vmatpush.msra.mxu0 0.0
    %652 = vmatpush.msra.mxu0 %v632
    %653 = vmatmul.f32.gmra.mxu0 %v635
    %v654 = vpop.f32.mrf.mxu0
    %v655 = vadd.f32 0.0, %v654
    %656 = vdwg.mxu0
    %659 = vrot.lane.b32.xlu0 %v629, 8
    %v660 = vpop.permute.xlu0 %659
    %661 = vrot.lane.b32.xlu0 %v655, 8
    %v662 = vpop.permute.xlu0 %661
    %vm665 = vcmask 97344
    %666 = vst.msk [vmem:[#allocation3] sm:$0xff] %vm665, %v660
    %667 = vst.msk [vmem:[#allocation3 + $0x8] sm:$0xff] %vm665, %v662
    %v668 = vld [vmem:[#allocation2] sm:$0xff]
    %v669 = vld [vmem:[#allocation2 + $0x8] sm:$0xff]
    %671 = vrot.lane.b32.xlu0 %v668, 116
    %v672 = vpop.permute.xlu0 %671
    %673 = vrot.lane.b32.xlu0 %v668, 84
    %v674 = vpop.permute.xlu0 %673
    %v675 = vsel %vm165, %v672, 0
    %v677 = vsel %vm165, %v674, 0
    %679 = vmatpush.xpose.msra.mxu0 0.0
    %680 = vmatpush.xpose.msra.mxu0 0.0
    %681 = vmatpush.xpose.msra.mxu0 0.0
    %682 = vmatpush.xpose.msra.mxu0 0.0
    %683 = vmatpush.xpose.msra.mxu0 0.0
    %684 = vmatpush.xpose.msra.mxu0 0.0
    %685 = vmatpush.xpose.msra.mxu0 0.0
    %686 = vmatpush.xpose.msra.mxu0 0.0
    %687 = vmatpush.xpose.msra.mxu0 0.0
    %688 = vmatpush.xpose.msra.mxu0 0.0
    %689 = vmatpush.xpose.msra.mxu0 0.0
    %690 = vmatpush.xpose.msra.mxu0 0.0
    %691 = vmatpush.xpose.msra.mxu0 0.0
    %692 = vmatpush.xpose.msra.mxu0 0.0
    %693 = vmatpush.xpose.msra.mxu0 0.0
    %694 = vmatpush.xpose.msra.mxu0 %v677
    %695 = vmatmul.f32.gmra.mxu0 %v675
    %v696 = vpop.f32.mrf.mxu0
    %v697 = vadd.f32 0.0, %v696
    %698 = vdwg.mxu0
    %700 = vrot.lane.b32.xlu0 %v669, 116
    %v701 = vpop.permute.xlu0 %700
    %702 = vrot.lane.b32.xlu0 %v669, 84
    %v703 = vpop.permute.xlu0 %702
    %v704 = vsel %vm165, %v701, 0
    %v706 = vsel %vm165, %v703, 0
    %708 = vmatpush.xpose.msra.mxu0 0.0
    %709 = vmatpush.xpose.msra.mxu0 0.0
    %710 = vmatpush.xpose.msra.mxu0 0.0
    %711 = vmatpush.xpose.msra.mxu0 0.0
    %712 = vmatpush.xpose.msra.mxu0 0.0
    %713 = vmatpush.xpose.msra.mxu0 0.0
    %714 = vmatpush.xpose.msra.mxu0 0.0
    %715 = vmatpush.xpose.msra.mxu0 0.0
    %716 = vmatpush.xpose.msra.mxu0 0.0
    %717 = vmatpush.xpose.msra.mxu0 0.0
    %718 = vmatpush.xpose.msra.mxu0 0.0
    %719 = vmatpush.xpose.msra.mxu0 0.0
    %720 = vmatpush.xpose.msra.mxu0 0.0
    %721 = vmatpush.xpose.msra.mxu0 0.0
    %722 = vmatpush.xpose.msra.mxu0 0.0
    %723 = vmatpush.xpose.msra.mxu0 %v706
    %724 = vmatmul.f32.gmra.mxu0 %v704
    %v725 = vpop.f32.mrf.mxu0
    %v726 = vadd.f32 0.0, %v725
    %727 = vdwg.mxu0
    %v728 = vmul.f32 %v697, 0.5
    %v729 = vmul.f32 %v726, 0.5
    %v730 = vsel %vm219, %v728, -inf
    %731 = vmax.xlane.f32.xlu0 %v730
    %v732 = vpop.xlane.xlu0 %731
    %v733 = vsel %vm219, %v729, -inf
    %734 = vmax.xlane.f32.xlu0 %v733
    %v735 = vpop.xlane.xlu0 %734
    %v736 = vsub.f32 %v728, %v732
    %v737 = vsub.f32 %v729, %v735
    %v738 = vmul.f32 %v736, 1.442695
    %v739 = vpow.pop %v738
    %v740 = vmul.f32 %v737, 1.442695
    %v741 = vpow.pop %v740
    %v742 = vsel %vm219, %v739, 0.0
    %743 = vadd.xlane.f32.xlu0 %v742
    %v744 = vpop.xlane.xlu0 %743
    %v745 = vsel %vm219, %v741, 0.0
    %746 = vadd.xlane.f32.xlu0 %v745
    %v747 = vpop.xlane.xlu0 %746
    %v748 = vrcp.pop %v744
    %v749 = vmul.f32 %v744, %v748
    %v750 = vsub.f32 1.0, %v749
    %v751 = vmul.f32 %v748, %v750
    %v752 = vadd.f32 %v748, %v751
    %vm753 = vweird.f32 %v744
    %vm754 = vweird.f32 %v748
    %vm755 = vmor %vm753, %vm754
    %v756 = vsel %vm755, %v748, %v752
    %v757 = vand.u32 2147483647, %v744
    %vm758 = vcmp.eq.f32.partialorder %v757, 8.507059e+37
    %v759 = vand.u32 %v744, 2147483648
    %v760 = vor.u32 1.1754944e-38, %v759
    %v761 = vsel %vm758, %v760, %v756
    %v762 = vmul.f32 %v739, %v761
    %v763 = vrcp.pop %v747
    %v764 = vmul.f32 %v747, %v763
    %v765 = vsub.f32 1.0, %v764
    %v766 = vmul.f32 %v763, %v765
    %v767 = vadd.f32 %v763, %v766
    %vm768 = vweird.f32 %v747
    %vm769 = vweird.f32 %v763
    %vm770 = vmor %vm768, %vm769
    %v771 = vsel %vm770, %v763, %v767
    %v772 = vand.u32 2147483647, %v747
    %vm773 = vcmp.eq.f32.partialorder %v772, 8.507059e+37
    %v774 = vand.u32 %v747, 2147483648
    %v775 = vor.u32 1.1754944e-38, %v774
    %v776 = vsel %vm773, %v775, %v771
    %v777 = vmul.f32 %v741, %v776
    %778 = vrot.lane.b32.xlu0 %v668, 52
    %v779 = vpop.permute.xlu0 %778
    %v782 = vsel %vm219, %v762, 0
    %784 = vmatpush.msra.mxu0 0.0
    %785 = vmatpush.msra.mxu0 0.0
    %786 = vmatpush.msra.mxu0 0.0
    %787 = vmatpush.msra.mxu0 0.0
    %788 = vmatpush.msra.mxu0 0.0
    %789 = vmatpush.msra.mxu0 0.0
    %790 = vmatpush.msra.mxu0 0.0
    %791 = vmatpush.msra.mxu0 0.0
    %792 = vmatpush.msra.mxu0 0.0
    %793 = vmatpush.msra.mxu0 0.0
    %794 = vmatpush.msra.mxu0 0.0
    %795 = vmatpush.msra.mxu0 0.0
    %796 = vmatpush.msra.mxu0 0.0
    %797 = vmatpush.msra.mxu0 0.0
    %798 = vmatpush.msra.mxu0 0.0
    %799 = vmatpush.msra.mxu0 %v779
    %800 = vmatmul.f32.gmra.mxu0 %v782
    %v801 = vpop.f32.mrf.mxu0
    %v802 = vadd.f32 0.0, %v801
    %803 = vdwg.mxu0
    %804 = vrot.lane.b32.xlu0 %v669, 52
    %v805 = vpop.permute.xlu0 %804
    %v808 = vsel %vm219, %v777, 0
    %810 = vmatpush.msra.mxu0 0.0
    %811 = vmatpush.msra.mxu0 0.0
    %812 = vmatpush.msra.mxu0 0.0
    %813 = vmatpush.msra.mxu0 0.0
    %814 = vmatpush.msra.mxu0 0.0
    %815 = vmatpush.msra.mxu0 0.0
    %816 = vmatpush.msra.mxu0 0.0
    %817 = vmatpush.msra.mxu0 0.0
    %818 = vmatpush.msra.mxu0 0.0
    %819 = vmatpush.msra.mxu0 0.0
    %820 = vmatpush.msra.mxu0 0.0
    %821 = vmatpush.msra.mxu0 0.0
    %822 = vmatpush.msra.mxu0 0.0
    %823 = vmatpush.msra.mxu0 0.0
    %824 = vmatpush.msra.mxu0 0.0
    %825 = vmatpush.msra.mxu0 %v805
    %826 = vmatmul.f32.gmra.mxu0 %v808
    %v827 = vpop.f32.mrf.mxu0
    %v828 = vadd.f32 0.0, %v827
    %829 = vdwg.mxu0
    %832 = vrot.lane.b32.xlu0 %v802, 12
    %v833 = vpop.permute.xlu0 %832
    %834 = vrot.lane.b32.xlu0 %v828, 12
    %v835 = vpop.permute.xlu0 %834
    %vm838 = vcmask 130144
    %839 = vst.msk [vmem:[#allocation3] sm:$0xff] %vm838, %v833
    %840 = vst.msk [vmem:[#allocation3 + $0x8] sm:$0xff] %vm838, %v835
    %v841 = vld [vmem:[#allocation2] sm:$0xff]
    %v842 = vld [vmem:[#allocation2 + $0x8] sm:$0xff]
    %844 = vrot.lane.b32.xlu0 %v841, 112
    %v845 = vpop.permute.xlu0 %844
    %846 = vrot.lane.b32.xlu0 %v841, 80
    %v847 = vpop.permute.xlu0 %846
    %v848 = vsel %vm165, %v845, 0
    %v850 = vsel %vm165, %v847, 0
    %852 = vmatpush.xpose.msra.mxu0 0.0
    %853 = vmatpush.xpose.msra.mxu0 0.0
    %854 = vmatpush.xpose.msra.mxu0 0.0
    %855 = vmatpush.xpose.msra.mxu0 0.0
    %856 = vmatpush.xpose.msra.mxu0 0.0
    %857 = vmatpush.xpose.msra.mxu0 0.0
    %858 = vmatpush.xpose.msra.mxu0 0.0
    %859 = vmatpush.xpose.msra.mxu0 0.0
    %860 = vmatpush.xpose.msra.mxu0 0.0
    %861 = vmatpush.xpose.msra.mxu0 0.0
    %862 = vmatpush.xpose.msra.mxu0 0.0
    %863 = vmatpush.xpose.msra.mxu0 0.0
    %864 = vmatpush.xpose.msra.mxu0 0.0
    %865 = vmatpush.xpose.msra.mxu0 0.0
    %866 = vmatpush.xpose.msra.mxu0 0.0
    %867 = vmatpush.xpose.msra.mxu0 %v850
    %868 = vmatmul.f32.gmra.mxu0 %v848
    %v869 = vpop.f32.mrf.mxu0
    %v870 = vadd.f32 0.0, %v869
    %871 = vdwg.mxu0
    %873 = vrot.lane.b32.xlu0 %v842, 112
    %v874 = vpop.permute.xlu0 %873
    %875 = vrot.lane.b32.xlu0 %v842, 80
    %v876 = vpop.permute.xlu0 %875
    %v877 = vsel %vm165, %v874, 0
    %v879 = vsel %vm165, %v876, 0
    %881 = vmatpush.xpose.msra.mxu0 0.0
    %882 = vmatpush.xpose.msra.mxu0 0.0
    %883 = vmatpush.xpose.msra.mxu0 0.0
    %884 = vmatpush.xpose.msra.mxu0 0.0
    %885 = vmatpush.xpose.msra.mxu0 0.0
    %886 = vmatpush.xpose.msra.mxu0 0.0
    %887 = vmatpush.xpose.msra.mxu0 0.0
    %888 = vmatpush.xpose.msra.mxu0 0.0
    %889 = vmatpush.xpose.msra.mxu0 0.0
    %890 = vmatpush.xpose.msra.mxu0 0.0
    %891 = vmatpush.xpose.msra.mxu0 0.0
    %892 = vmatpush.xpose.msra.mxu0 0.0
    %893 = vmatpush.xpose.msra.mxu0 0.0
    %894 = vmatpush.xpose.msra.mxu0 0.0
    %895 = vmatpush.xpose.msra.mxu0 0.0
    %896 = vmatpush.xpose.msra.mxu0 %v879
    %897 = vmatmul.f32.gmra.mxu0 %v877
    %v898 = vpop.f32.mrf.mxu0
    %v899 = vadd.f32 0.0, %v898
    %900 = vdwg.mxu0
    %v901 = vmul.f32 %v870, 0.5
    %v902 = vmul.f32 %v899, 0.5
    %v903 = vsel %vm219, %v901, -inf
    %904 = vmax.xlane.f32.xlu0 %v903
    %v905 = vpop.xlane.xlu0 %904
    %v906 = vsel %vm219, %v902, -inf
    %907 = vmax.xlane.f32.xlu0 %v906
    %v908 = vpop.xlane.xlu0 %907
    %v909 = vsub.f32 %v901, %v905
    %v910 = vsub.f32 %v902, %v908
    %v911 = vmul.f32 %v909, 1.442695
    %v912 = vpow.pop %v911
    %v913 = vmul.f32 %v910, 1.442695
    %v914 = vpow.pop %v913
    %v915 = vsel %vm219, %v912, 0.0
    %916 = vadd.xlane.f32.xlu0 %v915
    %v917 = vpop.xlane.xlu0 %916
    %v918 = vsel %vm219, %v914, 0.0
    %919 = vadd.xlane.f32.xlu0 %v918
    %v920 = vpop.xlane.xlu0 %919
    %v921 = vrcp.pop %v917
    %v922 = vmul.f32 %v917, %v921
    %v923 = vsub.f32 1.0, %v922
    %v924 = vmul.f32 %v921, %v923
    %v925 = vadd.f32 %v921, %v924
    %vm926 = vweird.f32 %v917
    %vm927 = vweird.f32 %v921
    %vm928 = vmor %vm926, %vm927
    %v929 = vsel %vm928, %v921, %v925
    %v930 = vand.u32 2147483647, %v917
    %vm931 = vcmp.eq.f32.partialorder %v930, 8.507059e+37
    %v932 = vand.u32 %v917, 2147483648
    %v933 = vor.u32 1.1754944e-38, %v932
    %v934 = vsel %vm931, %v933, %v929
    %v935 = vmul.f32 %v912, %v934
    %v936 = vrcp.pop %v920
    %v937 = vmul.f32 %v920, %v936
    %v938 = vsub.f32 1.0, %v937
    %v939 = vmul.f32 %v936, %v938
    %v940 = vadd.f32 %v936, %v939
    %vm941 = vweird.f32 %v920
    %vm942 = vweird.f32 %v936
    %vm943 = vmor %vm941, %vm942
    %v944 = vsel %vm943, %v936, %v940
    %v945 = vand.u32 2147483647, %v920
    %vm946 = vcmp.eq.f32.partialorder %v945, 8.507059e+37
    %v947 = vand.u32 %v920, 2147483648
    %v948 = vor.u32 1.1754944e-38, %v947
    %v949 = vsel %vm946, %v948, %v944
    %v950 = vmul.f32 %v914, %v949
    %951 = vrot.lane.b32.xlu0 %v841, 48
    %v952 = vpop.permute.xlu0 %951
    %v955 = vsel %vm219, %v935, 0
    %957 = vmatpush.msra.mxu0 0.0
    %958 = vmatpush.msra.mxu0 0.0
    %959 = vmatpush.msra.mxu0 0.0
    %960 = vmatpush.msra.mxu0 0.0
    %961 = vmatpush.msra.mxu0 0.0
    %962 = vmatpush.msra.mxu0 0.0
    %963 = vmatpush.msra.mxu0 0.0
    %964 = vmatpush.msra.mxu0 0.0
    %965 = vmatpush.msra.mxu0 0.0
    %966 = vmatpush.msra.mxu0 0.0
    %967 = vmatpush.msra.mxu0 0.0
    %968 = vmatpush.msra.mxu0 0.0
    %969 = vmatpush.msra.mxu0 0.0
    %970 = vmatpush.msra.mxu0 0.0
    %971 = vmatpush.msra.mxu0 0.0
    %972 = vmatpush.msra.mxu0 %v952
    %973 = vmatmul.f32.gmra.mxu0 %v955
    %v974 = vpop.f32.mrf.mxu0
    %v975 = vadd.f32 0.0, %v974
    %976 = vdwg.mxu0
    %977 = vrot.lane.b32.xlu0 %v842, 48
    %v978 = vpop.permute.xlu0 %977
    %v981 = vsel %vm219, %v950, 0
    %983 = vmatpush.msra.mxu0 0.0
    %984 = vmatpush.msra.mxu0 0.0
    %985 = vmatpush.msra.mxu0 0.0
    %986 = vmatpush.msra.mxu0 0.0
    %987 = vmatpush.msra.mxu0 0.0
    %988 = vmatpush.msra.mxu0 0.0
    %989 = vmatpush.msra.mxu0 0.0
    %990 = vmatpush.msra.mxu0 0.0
    %991 = vmatpush.msra.mxu0 0.0
    %992 = vmatpush.msra.mxu0 0.0
    %993 = vmatpush.msra.mxu0 0.0
    %994 = vmatpush.msra.mxu0 0.0
    %995 = vmatpush.msra.mxu0 0.0
    %996 = vmatpush.msra.mxu0 0.0
    %997 = vmatpush.msra.mxu0 0.0
    %998 = vmatpush.msra.mxu0 %v978
    %999 = vmatmul.f32.gmra.mxu0 %v981
    %v1000 = vpop.f32.mrf.mxu0
    %v1001 = vadd.f32 0.0, %v1000
    %1002 = vdwg.mxu0
    %1005 = vrot.lane.b32.xlu0 %v975, 16
    %v1006 = vpop.permute.xlu0 %1005
    %1007 = vrot.lane.b32.xlu0 %v1001, 16
    %v1008 = vpop.permute.xlu0 %1007
    %vm1011 = vcmask 162944
    %1012 = vst.msk [vmem:[#allocation3] sm:$0xff] %vm1011, %v1006
    %1013 = vst.msk [vmem:[#allocation3 + $0x8] sm:$0xff] %vm1011, %v1008
    %v1014 = vld [vmem:[#allocation2] sm:$0xff]
    %v1015 = vld [vmem:[#allocation2 + $0x8] sm:$0xff]
    %1017 = vrot.lane.b32.xlu0 %v1014, 108
    %v1018 = vpop.permute.xlu0 %1017
    %1019 = vrot.lane.b32.xlu0 %v1014, 76
    %v1020 = vpop.permute.xlu0 %1019
    %v1021 = vsel %vm165, %v1018, 0
    %v1023 = vsel %vm165, %v1020, 0
    %1025 = vmatpush.xpose.msra.mxu0 0.0
    %1026 = vmatpush.xpose.msra.mxu0 0.0
    %1027 = vmatpush.xpose.msra.mxu0 0.0
    %1028 = vmatpush.xpose.msra.mxu0 0.0
    %1029 = vmatpush.xpose.msra.mxu0 0.0
    %1030 = vmatpush.xpose.msra.mxu0 0.0
    %1031 = vmatpush.xpose.msra.mxu0 0.0
    %1032 = vmatpush.xpose.msra.mxu0 0.0
    %1033 = vmatpush.xpose.msra.mxu0 0.0
    %1034 = vmatpush.xpose.msra.mxu0 0.0
    %1035 = vmatpush.xpose.msra.mxu0 0.0
    %1036 = vmatpush.xpose.msra.mxu0 0.0
    %1037 = vmatpush.xpose.msra.mxu0 0.0
    %1038 = vmatpush.xpose.msra.mxu0 0.0
    %1039 = vmatpush.xpose.msra.mxu0 0.0
    %1040 = vmatpush.xpose.msra.mxu0 %v1023
    %1041 = vmatmul.f32.gmra.mxu0 %v1021
    %v1042 = vpop.f32.mrf.mxu0
    %v1043 = vadd.f32 0.0, %v1042
    %1044 = vdwg.mxu0
    %1046 = vrot.lane.b32.xlu0 %v1015, 108
    %v1047 = vpop.permute.xlu0 %1046
    %1048 = vrot.lane.b32.xlu0 %v1015, 76
    %v1049 = vpop.permute.xlu0 %1048
    %v1050 = vsel %vm165, %v1047, 0
    %v1052 = vsel %vm165, %v1049, 0
    %1054 = vmatpush.xpose.msra.mxu0 0.0
    %1055 = vmatpush.xpose.msra.mxu0 0.0
    %1056 = vmatpush.xpose.msra.mxu0 0.0
    %1057 = vmatpush.xpose.msra.mxu0 0.0
    %1058 = vmatpush.xpose.msra.mxu0 0.0
    %1059 = vmatpush.xpose.msra.mxu0 0.0
    %1060 = vmatpush.xpose.msra.mxu0 0.0
    %1061 = vmatpush.xpose.msra.mxu0 0.0
    %1062 = vmatpush.xpose.msra.mxu0 0.0
    %1063 = vmatpush.xpose.msra.mxu0 0.0
    %1064 = vmatpush.xpose.msra.mxu0 0.0
    %1065 = vmatpush.xpose.msra.mxu0 0.0
    %1066 = vmatpush.xpose.msra.mxu0 0.0
    %1067 = vmatpush.xpose.msra.mxu0 0.0
    %1068 = vmatpush.xpose.msra.mxu0 0.0
    %1069 = vmatpush.xpose.msra.mxu0 %v1052
    %1070 = vmatmul.f32.gmra.mxu0 %v1050
    %v1071 = vpop.f32.mrf.mxu0
    %v1072 = vadd.f32 0.0, %v1071
    %1073 = vdwg.mxu0
    %v1074 = vmul.f32 %v1043, 0.5
    %v1075 = vmul.f32 %v1072, 0.5
    %v1076 = vsel %vm219, %v1074, -inf
    %1077 = vmax.xlane.f32.xlu0 %v1076
    %v1078 = vpop.xlane.xlu0 %1077
    %v1079 = vsel %vm219, %v1075, -inf
    %1080 = vmax.xlane.f32.xlu0 %v1079
    %v1081 = vpop.xlane.xlu0 %1080
    %v1082 = vsub.f32 %v1074, %v1078
    %v1083 = vsub.f32 %v1075, %v1081
    %v1084 = vmul.f32 %v1082, 1.442695
    %v1085 = vpow.pop %v1084
    %v1086 = vmul.f32 %v1083, 1.442695
    %v1087 = vpow.pop %v1086
    %v1088 = vsel %vm219, %v1085, 0.0
    %1089 = vadd.xlane.f32.xlu0 %v1088
    %v1090 = vpop.xlane.xlu0 %1089
    %v1091 = vsel %vm219, %v1087, 0.0
    %1092 = vadd.xlane.f32.xlu0 %v1091
    %v1093 = vpop.xlane.xlu0 %1092
    %v1094 = vrcp.pop %v1090
    %v1095 = vmul.f32 %v1090, %v1094
    %v1096 = vsub.f32 1.0, %v1095
    %v1097 = vmul.f32 %v1094, %v1096
    %v1098 = vadd.f32 %v1094, %v1097
    %vm1099 = vweird.f32 %v1090
    %vm1100 = vweird.f32 %v1094
    %vm1101 = vmor %vm1099, %vm1100
    %v1102 = vsel %vm1101, %v1094, %v1098
    %v1103 = vand.u32 2147483647, %v1090
    %vm1104 = vcmp.eq.f32.partialorder %v1103, 8.507059e+37
    %v1105 = vand.u32 %v1090, 2147483648
    %v1106 = vor.u32 1.1754944e-38, %v1105
    %v1107 = vsel %vm1104, %v1106, %v1102
    %v1108 = vmul.f32 %v1085, %v1107
    %v1109 = vrcp.pop %v1093
    %v1110 = vmul.f32 %v1093, %v1109
    %v1111 = vsub.f32 1.0, %v1110
    %v1112 = vmul.f32 %v1109, %v1111
    %v1113 = vadd.f32 %v1109, %v1112
    %vm1114 = vweird.f32 %v1093
    %vm1115 = vweird.f32 %v1109
    %vm1116 = vmor %vm1114, %vm1115
    %v1117 = vsel %vm1116, %v1109, %v1113
    %v1118 = vand.u32 2147483647, %v1093
    %vm1119 = vcmp.eq.f32.partialorder %v1118, 8.507059e+37
    %v1120 = vand.u32 %v1093, 2147483648
    %v1121 = vor.u32 1.1754944e-38, %v1120
    %v1122 = vsel %vm1119, %v1121, %v1117
    %v1123 = vmul.f32 %v1087, %v1122
    %1124 = vrot.lane.b32.xlu0 %v1014, 44
    %v1125 = vpop.permute.xlu0 %1124
    %v1128 = vsel %vm219, %v1108, 0
    %1130 = vmatpush.msra.mxu0 0.0
    %1131 = vmatpush.msra.mxu0 0.0
    %1132 = vmatpush.msra.mxu0 0.0
    %1133 = vmatpush.msra.mxu0 0.0
    %1134 = vmatpush.msra.mxu0 0.0
    %1135 = vmatpush.msra.mxu0 0.0
    %1136 = vmatpush.msra.mxu0 0.0
    %1137 = vmatpush.msra.mxu0 0.0
    %1138 = vmatpush.msra.mxu0 0.0
    %1139 = vmatpush.msra.mxu0 0.0
    %1140 = vmatpush.msra.mxu0 0.0
    %1141 = vmatpush.msra.mxu0 0.0
    %1142 = vmatpush.msra.mxu0 0.0
    %1143 = vmatpush.msra.mxu0 0.0
    %1144 = vmatpush.msra.mxu0 0.0
    %1145 = vmatpush.msra.mxu0 %v1125
    %1146 = vmatmul.f32.gmra.mxu0 %v1128
    %v1147 = vpop.f32.mrf.mxu0
    %v1148 = vadd.f32 0.0, %v1147
    %1149 = vdwg.mxu0
    %1150 = vrot.lane.b32.xlu0 %v1015, 44
    %v1151 = vpop.permute.xlu0 %1150
    %v1154 = vsel %vm219, %v1123, 0
    %1156 = vmatpush.msra.mxu0 0.0
    %1157 = vmatpush.msra.mxu0 0.0
    %1158 = vmatpush.msra.mxu0 0.0
    %1159 = vmatpush.msra.mxu0 0.0
    %1160 = vmatpush.msra.mxu0 0.0
    %1161 = vmatpush.msra.mxu0 0.0
    %1162 = vmatpush.msra.mxu0 0.0
    %1163 = vmatpush.msra.mxu0 0.0
    %1164 = vmatpush.msra.mxu0 0.0
    %1165 = vmatpush.msra.mxu0 0.0
    %1166 = vmatpush.msra.mxu0 0.0
    %1167 = vmatpush.msra.mxu0 0.0
    %1168 = vmatpush.msra.mxu0 0.0
    %1169 = vmatpush.msra.mxu0 0.0
    %1170 = vmatpush.msra.mxu0 0.0
    %1171 = vmatpush.msra.mxu0 %v1151
    %1172 = vmatmul.f32.gmra.mxu0 %v1154
    %v1173 = vpop.f32.mrf.mxu0
    %v1174 = vadd.f32 0.0, %v1173
    %1175 = vdwg.mxu0
    %1178 = vrot.lane.b32.xlu0 %v1148, 20
    %v1179 = vpop.permute.xlu0 %1178
    %1180 = vrot.lane.b32.xlu0 %v1174, 20
    %v1181 = vpop.permute.xlu0 %1180
    %vm1184 = vcmask 195744
    %1185 = vst.msk [vmem:[#allocation3] sm:$0xff] %vm1184, %v1179
    %1186 = vst.msk [vmem:[#allocation3 + $0x8] sm:$0xff] %vm1184, %v1181
    %v1187 = vld [vmem:[#allocation2] sm:$0xff]
    %v1188 = vld [vmem:[#allocation2 + $0x8] sm:$0xff]
    %1190 = vrot.lane.b32.xlu0 %v1187, 104
    %v1191 = vpop.permute.xlu0 %1190
    %1192 = vrot.lane.b32.xlu0 %v1187, 72
    %v1193 = vpop.permute.xlu0 %1192
    %v1194 = vsel %vm165, %v1191, 0
    %v1196 = vsel %vm165, %v1193, 0
    %1198 = vmatpush.xpose.msra.mxu0 0.0
    %1199 = vmatpush.xpose.msra.mxu0 0.0
    %1200 = vmatpush.xpose.msra.mxu0 0.0
    %1201 = vmatpush.xpose.msra.mxu0 0.0
    %1202 = vmatpush.xpose.msra.mxu0 0.0
    %1203 = vmatpush.xpose.msra.mxu0 0.0
    %1204 = vmatpush.xpose.msra.mxu0 0.0
    %1205 = vmatpush.xpose.msra.mxu0 0.0
    %1206 = vmatpush.xpose.msra.mxu0 0.0
    %1207 = vmatpush.xpose.msra.mxu0 0.0
    %1208 = vmatpush.xpose.msra.mxu0 0.0
    %1209 = vmatpush.xpose.msra.mxu0 0.0
    %1210 = vmatpush.xpose.msra.mxu0 0.0
    %1211 = vmatpush.xpose.msra.mxu0 0.0
    %1212 = vmatpush.xpose.msra.mxu0 0.0
    %1213 = vmatpush.xpose.msra.mxu0 %v1196
    %1214 = vmatmul.f32.gmra.mxu0 %v1194
    %v1215 = vpop.f32.mrf.mxu0
    %v1216 = vadd.f32 0.0, %v1215
    %1217 = vdwg.mxu0
    %1219 = vrot.lane.b32.xlu0 %v1188, 104
    %v1220 = vpop.permute.xlu0 %1219
    %1221 = vrot.lane.b32.xlu0 %v1188, 72
    %v1222 = vpop.permute.xlu0 %1221
    %v1223 = vsel %vm165, %v1220, 0
    %v1225 = vsel %vm165, %v1222, 0
    %1227 = vmatpush.xpose.msra.mxu0 0.0
    %1228 = vmatpush.xpose.msra.mxu0 0.0
    %1229 = vmatpush.xpose.msra.mxu0 0.0
    %1230 = vmatpush.xpose.msra.mxu0 0.0
    %1231 = vmatpush.xpose.msra.mxu0 0.0
    %1232 = vmatpush.xpose.msra.mxu0 0.0
    %1233 = vmatpush.xpose.msra.mxu0 0.0
    %1234 = vmatpush.xpose.msra.mxu0 0.0
    %1235 = vmatpush.xpose.msra.mxu0 0.0
    %1236 = vmatpush.xpose.msra.mxu0 0.0
    %1237 = vmatpush.xpose.msra.mxu0 0.0
    %1238 = vmatpush.xpose.msra.mxu0 0.0
    %1239 = vmatpush.xpose.msra.mxu0 0.0
    %1240 = vmatpush.xpose.msra.mxu0 0.0
    %1241 = vmatpush.xpose.msra.mxu0 0.0
    %1242 = vmatpush.xpose.msra.mxu0 %v1225
    %1243 = vmatmul.f32.gmra.mxu0 %v1223
    %v1244 = vpop.f32.mrf.mxu0
    %v1245 = vadd.f32 0.0, %v1244
    %1246 = vdwg.mxu0
    %v1247 = vmul.f32 %v1216, 0.5
    %v1248 = vmul.f32 %v1245, 0.5
    %v1249 = vsel %vm219, %v1247, -inf
    %1250 = vmax.xlane.f32.xlu0 %v1249
    %v1251 = vpop.xlane.xlu0 %1250
    %v1252 = vsel %vm219, %v1248, -inf
    %1253 = vmax.xlane.f32.xlu0 %v1252
    %v1254 = vpop.xlane.xlu0 %1253
    %v1255 = vsub.f32 %v1247, %v1251
    %v1256 = vsub.f32 %v1248, %v1254
    %v1257 = vmul.f32 %v1255, 1.442695
    %v1258 = vpow.pop %v1257
    %v1259 = vmul.f32 %v1256, 1.442695
    %v1260 = vpow.pop %v1259
    %v1261 = vsel %vm219, %v1258, 0.0
    %1262 = vadd.xlane.f32.xlu0 %v1261
    %v1263 = vpop.xlane.xlu0 %1262
    %v1264 = vsel %vm219, %v1260, 0.0
    %1265 = vadd.xlane.f32.xlu0 %v1264
    %v1266 = vpop.xlane.xlu0 %1265
    %v1267 = vrcp.pop %v1263
    %v1268 = vmul.f32 %v1263, %v1267
    %v1269 = vsub.f32 1.0, %v1268
    %v1270 = vmul.f32 %v1267, %v1269
    %v1271 = vadd.f32 %v1267, %v1270
    %vm1272 = vweird.f32 %v1263
    %vm1273 = vweird.f32 %v1267
    %vm1274 = vmor %vm1272, %vm1273
    %v1275 = vsel %vm1274, %v1267, %v1271
    %v1276 = vand.u32 2147483647, %v1263
    %vm1277 = vcmp.eq.f32.partialorder %v1276, 8.507059e+37
    %v1278 = vand.u32 %v1263, 2147483648
    %v1279 = vor.u32 1.1754944e-38, %v1278
    %v1280 = vsel %vm1277, %v1279, %v1275
    %v1281 = vmul.f32 %v1258, %v1280
    %v1282 = vrcp.pop %v1266
    %v1283 = vmul.f32 %v1266, %v1282
    %v1284 = vsub.f32 1.0, %v1283
    %v1285 = vmul.f32 %v1282, %v1284
    %v1286 = vadd.f32 %v1282, %v1285
    %vm1287 = vweird.f32 %v1266
    %vm1288 = vweird.f32 %v1282
    %vm1289 = vmor %vm1287, %vm1288
    %v1290 = vsel %vm1289, %v1282, %v1286
    %v1291 = vand.u32 2147483647, %v1266
    %vm1292 = vcmp.eq.f32.partialorder %v1291, 8.507059e+37
    %v1293 = vand.u32 %v1266, 2147483648
    %v1294 = vor.u32 1.1754944e-38, %v1293
    %v1295 = vsel %vm1292, %v1294, %v1290
    %v1296 = vmul.f32 %v1260, %v1295
    %1297 = vrot.lane.b32.xlu0 %v1187, 40
    %v1298 = vpop.permute.xlu0 %1297
    %v1301 = vsel %vm219, %v1281, 0
    %1303 = vmatpush.msra.mxu0 0.0
    %1304 = vmatpush.msra.mxu0 0.0
    %1305 = vmatpush.msra.mxu0 0.0
    %1306 = vmatpush.msra.mxu0 0.0
    %1307 = vmatpush.msra.mxu0 0.0
    %1308 = vmatpush.msra.mxu0 0.0
    %1309 = vmatpush.msra.mxu0 0.0
    %1310 = vmatpush.msra.mxu0 0.0
    %1311 = vmatpush.msra.mxu0 0.0
    %1312 = vmatpush.msra.mxu0 0.0
    %1313 = vmatpush.msra.mxu0 0.0
    %1314 = vmatpush.msra.mxu0 0.0
    %1315 = vmatpush.msra.mxu0 0.0
    %1316 = vmatpush.msra.mxu0 0.0
    %1317 = vmatpush.msra.mxu0 0.0
    %1318 = vmatpush.msra.mxu0 %v1298
    %1319 = vmatmul.f32.gmra.mxu0 %v1301
    %v1320 = vpop.f32.mrf.mxu0
    %v1321 = vadd.f32 0.0, %v1320
    %1322 = vdwg.mxu0
    %1323 = vrot.lane.b32.xlu0 %v1188, 40
    %v1324 = vpop.permute.xlu0 %1323
    %v1327 = vsel %vm219, %v1296, 0
    %1329 = vmatpush.msra.mxu0 0.0
    %1330 = vmatpush.msra.mxu0 0.0
    %1331 = vmatpush.msra.mxu0 0.0
    %1332 = vmatpush.msra.mxu0 0.0
    %1333 = vmatpush.msra.mxu0 0.0
    %1334 = vmatpush.msra.mxu0 0.0
    %1335 = vmatpush.msra.mxu0 0.0
    %1336 = vmatpush.msra.mxu0 0.0
    %1337 = vmatpush.msra.mxu0 0.0
    %1338 = vmatpush.msra.mxu0 0.0
    %1339 = vmatpush.msra.mxu0 0.0
    %1340 = vmatpush.msra.mxu0 0.0
    %1341 = vmatpush.msra.mxu0 0.0
    %1342 = vmatpush.msra.mxu0 0.0
    %1343 = vmatpush.msra.mxu0 0.0
    %1344 = vmatpush.msra.mxu0 %v1324
    %1345 = vmatmul.f32.gmra.mxu0 %v1327
    %v1346 = vpop.f32.mrf.mxu0
    %v1347 = vadd.f32 0.0, %v1346
    %1348 = vdwg.mxu0
    %1351 = vrot.lane.b32.xlu0 %v1321, 24
    %v1352 = vpop.permute.xlu0 %1351
    %1353 = vrot.lane.b32.xlu0 %v1347, 24
    %v1354 = vpop.permute.xlu0 %1353
    %vm1357 = vcmask 228544
    %1358 = vst.msk [vmem:[#allocation3] sm:$0xff] %vm1357, %v1352
    %1359 = vst.msk [vmem:[#allocation3 + $0x8] sm:$0xff] %vm1357, %v1354
    %v1360 = vld [vmem:[#allocation2] sm:$0xff]
    %v1361 = vld [vmem:[#allocation2 + $0x8] sm:$0xff]
    %1363 = vrot.lane.b32.xlu0 %v1360, 100
    %v1364 = vpop.permute.xlu0 %1363
    %1365 = vrot.lane.b32.xlu0 %v1360, 68
    %v1366 = vpop.permute.xlu0 %1365
    %v1367 = vsel %vm165, %v1364, 0
    %v1369 = vsel %vm165, %v1366, 0
    %1371 = vmatpush.xpose.msra.mxu0 0.0
    %1372 = vmatpush.xpose.msra.mxu0 0.0
    %1373 = vmatpush.xpose.msra.mxu0 0.0
    %1374 = vmatpush.xpose.msra.mxu0 0.0
    %1375 = vmatpush.xpose.msra.mxu0 0.0
    %1376 = vmatpush.xpose.msra.mxu0 0.0
    %1377 = vmatpush.xpose.msra.mxu0 0.0
    %1378 = vmatpush.xpose.msra.mxu0 0.0
    %1379 = vmatpush.xpose.msra.mxu0 0.0
    %1380 = vmatpush.xpose.msra.mxu0 0.0
    %1381 = vmatpush.xpose.msra.mxu0 0.0
    %1382 = vmatpush.xpose.msra.mxu0 0.0
    %1383 = vmatpush.xpose.msra.mxu0 0.0
    %1384 = vmatpush.xpose.msra.mxu0 0.0
    %1385 = vmatpush.xpose.msra.mxu0 0.0
    %1386 = vmatpush.xpose.msra.mxu0 %v1369
    %1387 = vmatmul.f32.gmra.mxu0 %v1367
    %v1388 = vpop.f32.mrf.mxu0
    %v1389 = vadd.f32 0.0, %v1388
    %1390 = vdwg.mxu0
    %1392 = vrot.lane.b32.xlu0 %v1361, 100
    %v1393 = vpop.permute.xlu0 %1392
    %1394 = vrot.lane.b32.xlu0 %v1361, 68
    %v1395 = vpop.permute.xlu0 %1394
    %v1396 = vsel %vm165, %v1393, 0
    %v1398 = vsel %vm165, %v1395, 0
    %1400 = vmatpush.xpose.msra.mxu0 0.0
    %1401 = vmatpush.xpose.msra.mxu0 0.0
    %1402 = vmatpush.xpose.msra.mxu0 0.0
    %1403 = vmatpush.xpose.msra.mxu0 0.0
    %1404 = vmatpush.xpose.msra.mxu0 0.0
    %1405 = vmatpush.xpose.msra.mxu0 0.0
    %1406 = vmatpush.xpose.msra.mxu0 0.0
    %1407 = vmatpush.xpose.msra.mxu0 0.0
    %1408 = vmatpush.xpose.msra.mxu0 0.0
    %1409 = vmatpush.xpose.msra.mxu0 0.0
    %1410 = vmatpush.xpose.msra.mxu0 0.0
    %1411 = vmatpush.xpose.msra.mxu0 0.0
    %1412 = vmatpush.xpose.msra.mxu0 0.0
    %1413 = vmatpush.xpose.msra.mxu0 0.0
    %1414 = vmatpush.xpose.msra.mxu0 0.0
    %1415 = vmatpush.xpose.msra.mxu0 %v1398
    %1416 = vmatmul.f32.gmra.mxu0 %v1396
    %v1417 = vpop.f32.mrf.mxu0
    %v1418 = vadd.f32 0.0, %v1417
    %1419 = vdwg.mxu0
    %v1420 = vmul.f32 %v1389, 0.5
    %v1421 = vmul.f32 %v1418, 0.5
    %v1422 = vsel %vm219, %v1420, -inf
    %1423 = vmax.xlane.f32.xlu0 %v1422
    %v1424 = vpop.xlane.xlu0 %1423
    %v1425 = vsel %vm219, %v1421, -inf
    %1426 = vmax.xlane.f32.xlu0 %v1425
    %v1427 = vpop.xlane.xlu0 %1426
    %v1428 = vsub.f32 %v1420, %v1424
    %v1429 = vsub.f32 %v1421, %v1427
    %v1430 = vmul.f32 %v1428, 1.442695
    %v1431 = vpow.pop %v1430
    %v1432 = vmul.f32 %v1429, 1.442695
    %v1433 = vpow.pop %v1432
    %v1434 = vsel %vm219, %v1431, 0.0
    %1435 = vadd.xlane.f32.xlu0 %v1434
    %v1436 = vpop.xlane.xlu0 %1435
    %v1437 = vsel %vm219, %v1433, 0.0
    %1438 = vadd.xlane.f32.xlu0 %v1437
    %v1439 = vpop.xlane.xlu0 %1438
    %v1440 = vrcp.pop %v1436
    %v1441 = vmul.f32 %v1436, %v1440
    %v1442 = vsub.f32 1.0, %v1441
    %v1443 = vmul.f32 %v1440, %v1442
    %v1444 = vadd.f32 %v1440, %v1443
    %vm1445 = vweird.f32 %v1436
    %vm1446 = vweird.f32 %v1440
    %vm1447 = vmor %vm1445, %vm1446
    %v1448 = vsel %vm1447, %v1440, %v1444
    %v1449 = vand.u32 2147483647, %v1436
    %vm1450 = vcmp.eq.f32.partialorder %v1449, 8.507059e+37
    %v1451 = vand.u32 %v1436, 2147483648
    %v1452 = vor.u32 1.1754944e-38, %v1451
    %v1453 = vsel %vm1450, %v1452, %v1448
    %v1454 = vmul.f32 %v1431, %v1453
    %v1455 = vrcp.pop %v1439
    %v1456 = vmul.f32 %v1439, %v1455
    %v1457 = vsub.f32 1.0, %v1456
    %v1458 = vmul.f32 %v1455, %v1457
    %v1459 = vadd.f32 %v1455, %v1458
    %vm1460 = vweird.f32 %v1439
    %vm1461 = vweird.f32 %v1455
    %vm1462 = vmor %vm1460, %vm1461
    %v1463 = vsel %vm1462, %v1455, %v1459
    %v1464 = vand.u32 2147483647, %v1439
    %vm1465 = vcmp.eq.f32.partialorder %v1464, 8.507059e+37
    %v1466 = vand.u32 %v1439, 2147483648
    %v1467 = vor.u32 1.1754944e-38, %v1466
    %v1468 = vsel %vm1465, %v1467, %v1463
    %v1469 = vmul.f32 %v1433, %v1468
    %1470 = vrot.lane.b32.xlu0 %v1360, 36
    %v1471 = vpop.permute.xlu0 %1470
    %v1474 = vsel %vm219, %v1454, 0
    %1476 = vmatpush.msra.mxu0 0.0
    %1477 = vmatpush.msra.mxu0 0.0
    %1478 = vmatpush.msra.mxu0 0.0
    %1479 = vmatpush.msra.mxu0 0.0
    %1480 = vmatpush.msra.mxu0 0.0
    %1481 = vmatpush.msra.mxu0 0.0
    %1482 = vmatpush.msra.mxu0 0.0
    %1483 = vmatpush.msra.mxu0 0.0
    %1484 = vmatpush.msra.mxu0 0.0
    %1485 = vmatpush.msra.mxu0 0.0
    %1486 = vmatpush.msra.mxu0 0.0
    %1487 = vmatpush.msra.mxu0 0.0
    %1488 = vmatpush.msra.mxu0 0.0
    %1489 = vmatpush.msra.mxu0 0.0
    %1490 = vmatpush.msra.mxu0 0.0
    %1491 = vmatpush.msra.mxu0 %v1471
    %1492 = vmatmul.f32.gmra.mxu0 %v1474
    %v1493 = vpop.f32.mrf.mxu0
    %v1494 = vadd.f32 0.0, %v1493
    %1495 = vdwg.mxu0
    %1496 = vrot.lane.b32.xlu0 %v1361, 36
    %v1497 = vpop.permute.xlu0 %1496
    %v1500 = vsel %vm219, %v1469, 0
    %1502 = vmatpush.msra.mxu0 0.0
    %1503 = vmatpush.msra.mxu0 0.0
    %1504 = vmatpush.msra.mxu0 0.0
    %1505 = vmatpush.msra.mxu0 0.0
    %1506 = vmatpush.msra.mxu0 0.0
    %1507 = vmatpush.msra.mxu0 0.0
    %1508 = vmatpush.msra.mxu0 0.0
    %1509 = vmatpush.msra.mxu0 0.0
    %1510 = vmatpush.msra.mxu0 0.0
    %1511 = vmatpush.msra.mxu0 0.0
    %1512 = vmatpush.msra.mxu0 0.0
    %1513 = vmatpush.msra.mxu0 0.0
    %1514 = vmatpush.msra.mxu0 0.0
    %1515 = vmatpush.msra.mxu0 0.0
    %1516 = vmatpush.msra.mxu0 0.0
    %1517 = vmatpush.msra.mxu0 %v1497
    %1518 = vmatmul.f32.gmra.mxu0 %v1500
    %v1519 = vpop.f32.mrf.mxu0
    %v1520 = vadd.f32 0.0, %v1519
    %1521 = vdwg.mxu0
    %1524 = vrot.lane.b32.xlu0 %v1494, 28
    %v1525 = vpop.permute.xlu0 %1524
    %1526 = vrot.lane.b32.xlu0 %v1520, 28
    %v1527 = vpop.permute.xlu0 %1526
    %vm1530 = vcmask 261344
    %1531 = vst.msk [vmem:[#allocation3] sm:$0xff] %vm1530, %v1525
    %1532 = vst.msk [vmem:[#allocation3 + $0x8] sm:$0xff] %vm1530, %v1527
    %v1533 = vld [vmem:[#allocation3] sm:$0xff]
    %v1534 = vld [vmem:[#allocation3 + $0x8] sm:$0xff]
    %v1535 = vld [vmem:[%s6] sm:$0xff]
    %v1536 = vld [vmem:[%s6 + $0x8] sm:$0xff]
    %v1537 = vld [vmem:[%s6 + $0x10] sm:$0xff]
    %v1538 = vld [vmem:[%s6 + $0x18] sm:$0xff]
    %v1539 = vld [vmem:[%s7] sm:$0x1]
    %v1541 = vperm.slane %v1539, 0
    %v1544 = vsel %vm54, %v1533, 0
    %v1547 = vsel %vm54, %v1534, 0
    %1549 = vmatpush.msra.mxu0 0.0
    %1550 = vmatpush.msra.mxu0 0.0
    %1551 = vmatpush.msra.mxu0 0.0
    %1552 = vmatpush.msra.mxu0 0.0
    %1553 = vmatpush.msra.mxu0 0.0
    %1554 = vmatpush.msra.mxu0 0.0
    %1555 = vmatpush.msra.mxu0 0.0
    %1556 = vmatpush.msra.mxu0 0.0
    %1557 = vmatpush.msra.mxu0 0.0
    %1558 = vmatpush.msra.mxu0 0.0
    %1559 = vmatpush.msra.mxu0 0.0
    %1560 = vmatpush.msra.mxu0 0.0
    %1561 = vmatpush.msra.mxu0 %v1538
    %1562 = vmatpush.msra.mxu0 %v1537
    %1563 = vmatpush.msra.mxu0 %v1536
    %1564 = vmatpush.msra.mxu0 %v1535
    %1565 = vmatmul.f32.gmra.mxu0 %v1544
    %v1566 = vpop.f32.mrf.mxu0
    %v1567 = vadd.f32 %v1541, %v1566
    %1568 = vmatmul.f32.gmra.mxu0 %v1547
    %v1569 = vpop.f32.mrf.mxu0
    %v1570 = vadd.f32 %v1541, %v1569
    %1571 = vdwg.mxu0
    %1573 = vset.pattern.permute.xlu0 0
    %1574 = vperm.xlu0 %1573, %v50
    %v1575 = vpop.permute.xlu0 %1574
    %1578 = vset.pattern.permute.xlu0 0
    %1579 = vperm.xlu0 %1578, %v51
    %v1580 = vpop.permute.xlu0 %1579
    %v1582 = vmul.f32 %v1575, %v1567
    %v1583 = vmul.f32 %v1580, %v1570
    %v1584 = vadd.f32 %v48, %v1582
    %v1585 = vadd.f32 %v49, %v1583
    %v1586 = vld [vmem:[%s8] sm:$0x1]
    %v1587 = vld [vmem:[%s9] sm:$0x1]
    %v1588 = vsel %vm54, %v1584, 0.0
    %1589 = vadd.xlane.f32.xlu0 %v1588
    %v1590 = vpop.xlane.xlu0 %1589
    %v1591 = vsel %vm54, %v1585, 0.0
    %1592 = vadd.xlane.f32.xlu0 %v1591
    %v1593 = vpop.xlane.xlu0 %1592
    %v1594 = vmul.f32 %v1590, %v67
    %v1595 = vmul.f32 %v1593, %v67
    %v1596 = vmul.f32 %v1584, %v1584
    %v1597 = vmul.f32 %v1585, %v1585
    %v1598 = vsel %vm54, %v1596, 0.0
    %1599 = vadd.xlane.f32.xlu0 %v1598
    %v1600 = vpop.xlane.xlu0 %1599
    %v1601 = vsel %vm54, %v1597, 0.0
    %1602 = vadd.xlane.f32.xlu0 %v1601
    %v1603 = vpop.xlane.xlu0 %1602
    %v1604 = vmul.f32 %v1600, %v67
    %v1605 = vmul.f32 %v1603, %v67
    %v1606 = vmul.f32 %v1594, %v1594
    %v1607 = vmul.f32 %v1595, %v1595
    %v1608 = vsub.f32 %v1604, %v1606
    %v1609 = vsub.f32 %v1605, %v1607
    %v1610 = vsub.f32 %v1584, %v1594
    %v1611 = vsub.f32 %v1585, %v1595
    %v1612 = vadd.f32 %v1608, 1e-05
    %v1613 = vadd.f32 %v1609, 1e-05
    %v1614 = vrsqrt.pop %v1612
    %v1615 = vmul.f32 %v1614, %v1612
    %v1616 = vmul.f32 %v1615, %v1614
    %v1617 = vmul.f32 0.5, %v1616
    %v1618 = vsub.f32 1.5, %v1617
    %v1619 = vmul.f32 %v1614, %v1618
    %vm1620 = vweird.f32 %v1612
    %vm1621 = vweird.f32 %v1614
    %vm1622 = vmor %vm1620, %vm1621
    %v1623 = vsel %vm1622, %v1614, %v1619
    %v1624 = vrsqrt.pop %v1613
    %v1625 = vmul.f32 %v1624, %v1613
    %v1626 = vmul.f32 %v1625, %v1624
    %v1627 = vmul.f32 0.5, %v1626
    %v1628 = vsub.f32 1.5, %v1627
    %v1629 = vmul.f32 %v1624, %v1628
    %vm1630 = vweird.f32 %v1613
    %vm1631 = vweird.f32 %v1624
    %vm1632 = vmor %vm1630, %vm1631
    %v1633 = vsel %vm1632, %v1624, %v1629
    %v1634 = vmul.f32 %v1610, %v1623
    %v1635 = vmul.f32 %v1611, %v1633
    %v1637 = vperm.slane %v1586, 0
    %v1639 = vmul.f32 %v1634, %v1637
    %v1640 = vmul.f32 %v1635, %v1637
    %v1642 = vperm.slane %v1587, 0
    %v1644 = vadd.f32 %v1639, %v1642
    %v1645 = vadd.f32 %v1640, %v1642
    %v1646 = vld [vmem:[%s10] sm:$0xff]
    %v1647 = vld [vmem:[%s10 + $0x8] sm:$0xff]
    %v1648 = vld [vmem:[%s10 + $0x10] sm:$0xff]
    %v1649 = vld [vmem:[%s10 + $0x18] sm:$0xff]
    %v1650 = vld [vmem:[%s11] sm:$0x1]
    %v1652 = vperm.slane %v1650, 0
    %v1655 = vsel %vm54, %v1644, 0
    %v1658 = vsel %vm54, %v1645, 0
    %1660 = vmatpush.msra.mxu0 0.0
    %1661 = vmatpush.msra.mxu0 0.0
    %1662 = vmatpush.msra.mxu0 0.0
    %1663 = vmatpush.msra.mxu0 0.0
    %1664 = vmatpush.msra.mxu0 0.0
    %1665 = vmatpush.msra.mxu0 0.0
    %1666 = vmatpush.msra.mxu0 0.0
    %1667 = vmatpush.msra.mxu0 0.0
    %1668 = vmatpush.msra.mxu0 0.0
    %1669 = vmatpush.msra.mxu0 0.0
    %1670 = vmatpush.msra.mxu0 0.0
    %1671 = vmatpush.msra.mxu0 0.0
    %1672 = vmatpush.msra.mxu0 %v1649
    %1673 = vmatpush.msra.mxu0 %v1648
    %1674 = vmatpush.msra.mxu0 %v1647
    %1675 = vmatpush.msra.mxu0 %v1646
    %1676 = vmatmul.f32.gmra.mxu0 %v1655
    %v1677 = vpop.f32.mrf.mxu0
    %v1678 = vadd.f32 %v1652, %v1677
    %1679 = vmatmul.f32.gmra.mxu0 %v1658
    %v1680 = vpop.f32.mrf.mxu0
    %v1681 = vadd.f32 %v1652, %v1680
    %1682 = vdwg.mxu0
    %v1683 = vmul.f32 %v1678, %v1678
    %v1684 = vmul.f32 %v1681, %v1681
    %v1685 = vmul.f32 %v1678, %v1683
    %v1686 = vmul.f32 %v1681, %v1684
    %v1687 = vmul.f32 %v1685, 0.044715
    %v1688 = vmul.f32 %v1686, 0.044715
    %v1689 = vadd.f32 %v1678, %v1687
    %v1690 = vadd.f32 %v1681, %v1688
    %v1691 = vmul.f32 %v1689, 0.7978846
    %v1692 = vmul.f32 %v1690, 0.7978846
    %v1693 = vtanh.pop %v1691
    %v1694 = vtanh.pop %v1692
    %v1695 = vadd.f32 %v1693, 1.0
    %v1696 = vadd.f32 %v1694, 1.0
    %v1697 = vmul.f32 %v1695, 0.5
    %v1698 = vmul.f32 %v1696, 0.5
    %v1699 = vmul.f32 %v1678, %v1697
    %v1700 = vmul.f32 %v1681, %v1698
    %v1701 = vld [vmem:[%s12] sm:$0xff]
    %v1702 = vld [vmem:[%s12 + $0x8] sm:$0xff]
    %v1703 = vld [vmem:[%s12 + $0x10] sm:$0xff]
    %v1704 = vld [vmem:[%s12 + $0x18] sm:$0xff]
    %v1705 = vld [vmem:[%s12 + $0x20] sm:$0xff]
    %v1706 = vld [vmem:[%s12 + $0x28] sm:$0xff]
    %v1707 = vld [vmem:[%s12 + $0x30] sm:$0xff]
    %v1708 = vld [vmem:[%s12 + $0x38] sm:$0xff]
    %v1709 = vld [vmem:[%s12 + $0x40] sm:$0xff]
    %v1710 = vld [vmem:[%s12 + $0x48] sm:$0xff]
    %v1711 = vld [vmem:[%s12 + $0x50] sm:$0xff]
    %v1712 = vld [vmem:[%s12 + $0x58] sm:$0xff]
    %v1713 = vld [vmem:[%s12 + $0x60] sm:$0xff]
    %v1714 = vld [vmem:[%s12 + $0x68] sm:$0xff]
    %v1715 = vld [vmem:[%s12 + $0x70] sm:$0xff]
    %v1716 = vld [vmem:[%s12 + $0x78] sm:$0xff]
    %v1717 = vld [vmem:[%s13] sm:$0x1]
    %v1719 = vperm.slane %v1717, 0
    %1721 = vmatpush.msra.mxu0 %v1716
    %1722 = vmatpush.msra.mxu0 %v1715
    %1723 = vmatpush.msra.mxu0 %v1714
    %1724 = vmatpush.msra.mxu0 %v1713
    %1725 = vmatpush.msra.mxu0 %v1712
    %1726 = vmatpush.msra.mxu0 %v1711
    %1727 = vmatpush.msra.mxu0 %v1710
    %1728 = vmatpush.msra.mxu0 %v1709
    %1729 = vmatpush.msra.mxu0 %v1708
    %1730 = vmatpush.msra.mxu0 %v1707
    %1731 = vmatpush.msra.mxu0 %v1706
    %1732 = vmatpush.msra.mxu0 %v1705
    %1733 = vmatpush.msra.mxu0 %v1704
    %1734 = vmatpush.msra.mxu0 %v1703
    %1735 = vmatpush.msra.mxu0 %v1702
    %1736 = vmatpush.msra.mxu0 %v1701
    %1737 = vmatmul.f32.gmra.mxu0 %v1699
    %v1738 = vpop.f32.mrf.mxu0
    %v1739 = vadd.f32 %v1719, %v1738
    %1740 = vmatmul.f32.gmra.mxu0 %v1700
    %v1741 = vpop.f32.mrf.mxu0
    %v1742 = vadd.f32 %v1719, %v1741
    %1743 = vdwg.mxu0
    %1744 = vset.pattern.permute.xlu0 1
    %1745 = vperm.xlu0 %1744, %v50
    %v1746 = vpop.permute.xlu0 %1745
    %1748 = vset.pattern.permute.xlu0 1
    %1749 = vperm.xlu0 %1748, %v51
    %v1750 = vpop.permute.xlu0 %1749
    %v1752 = vmul.f32 %v1746, %v1739
    %v1753 = vmul.f32 %v1750, %v1742
    %v1754 = vadd.f32 %v1584, %v1752
    %v1755 = vadd.f32 %v1585, %v1753
    %1756 = vst.msk [vmem:[#allocation4] sm:$0xff] %vm54, %v1754
    %1757 = vst.msk [vmem:[#allocation4 + $0x8] sm:$0xff] %vm54, %v1755
    // Predicated region
    $region58: #{tpu_custom_call.1} parent=1 // pred_check
      _
    $region59: #{tpu_custom_call.1} parent=1 // pred_check_branch
      %1759 = sbr.rel (0) target = $region61
    $region60: #{tpu_custom_call.1} parent=1 // pred_region
      %1761 = vsyncadd [#allocation5], 0
      %s1762 = sshll.u32 [#allocation4], 4
      %s1763 = int_to_ptr.vmem [resolvable:$true] %s1762
      %s1764 = sshll.u32 %s14, 4
      %s1765 = int_to_ptr.hbm [resolvable:$true] %s1764
      %1770 = dma.vmem_to_hbm [thread:$0]  %s1763, 256, %s1765, [#allocation5], 128, 128, 8
    $region61: #{tpu_custom_call.1} parent=1 // pred_fallthru
      _
    // Predicated region
    $region62: #{tpu_custom_call.1} parent=1 // pred_check
      _
    $region63: #{tpu_custom_call.1} parent=1 // pred_check_branch
      %1772 = sbr.rel (0) target = $region65
    $region64: #{tpu_custom_call.1} parent=1 // pred_region
      %1774 = dma.done [#allocation5], 256
    $region65: #{tpu_custom_call.1} parent=1 // pred_fallthru
      _
    %1775 = vsyncpa [#allocation5], 1

</llo_original>
